<compile_context>
chip_gen: v5e
topology: v5e:2x2
jax: 0.10.0
libtpu: 0.0.40
codegen_flags: <defaults>
</compile_context>

<pallas_src>
import functools

import jax
import jax.numpy as jnp
from jax.experimental import pallas as pl
from jax.experimental.pallas import tpu as pltpu


def _round_up(a: int, b: int) -> int:
    return (a + b - 1) // b * b


# ------------------------------ fused kernel ------------------------------
def _graph_conv_kernel(
    # scalar prefetch (SMEM): per-node-tile CSR chunk start / count
    cs_ref, nc_ref,
    # per-edge-chunk inputs: fused features [tile_e, 3*in_p], dest ids [1, tile_e]
    ef_ref, col_ref,
    # per-node-tile input
    x_ref,
    # message MLP params (first layer pre-stacked: src|dst|edge)
    w_msg1_ref, mb1_ref, mw2_ref, mb2_ref,
    # update MLP params (first layer row-split: x / agg)
    uw_x_ref, uw_a_ref, ub1_ref, uw2_ref, ub2_ref,
    # output + scratch
    out_ref, acc_ref,
    *, tile_n, tile_e, compute_dtype):
  i = pl.program_id(0)                    # node tile
  j = pl.program_id(1)                    # edge chunk within this tile's range
  f32 = jnp.float32

  @pl.when(j == 0)
  def _init():
    acc_ref[...] = jnp.zeros_like(acc_ref)

  # Only chunks that can contain edges destined for node tile i are processed;
  # chunks past this tile's CSR range are skipped (their DMA block index is
  # clamped to the previous chunk, so no extra HBM traffic is issued either).
  @pl.when(j < nc_ref[i])
  def _accumulate():
    # message MLP: single fused first-layer dot, K = 3*in_p
    h = (jnp.dot(ef_ref[...], w_msg1_ref[...], preferred_element_type=f32)
         + mb1_ref[...])
    h = jnp.maximum(h, 0.0)                                   # fp32 VPU math
    msg = (jnp.dot(h.astype(compute_dtype), mw2_ref[...],
                   preferred_element_type=f32) + mb2_ref[...])

    # Local scatter-add: one-hot (tile-local node ids vs this chunk's cols)
    # contracted on the MXU; out-of-tile / padded (sentinel) edges never match.
    # NOTE: msg is rounded to compute_dtype here (the dominant bf16-drift
    # source); the accumulation itself stays fp32 in acc_ref.
    node_ids = (jax.lax.broadcasted_iota(jnp.int32, (tile_n, tile_e), 0)
                + i * tile_n)
    onehot = (node_ids == col_ref[...]).astype(compute_dtype)
    acc_ref[...] += jnp.dot(onehot, msg.astype(compute_dtype),
                            preferred_element_type=f32)

  @pl.when(j == pl.num_programs(1) - 1)
  def _finalize():
    # update MLP: split first layer -> no [tile_n, in+out] concat copy
    h2 = (jnp.dot(x_ref[...], uw_x_ref[...], preferred_element_type=f32)
          + jnp.dot(acc_ref[...].astype(compute_dtype), uw_a_ref[...],
                    preferred_element_type=f32)
          + ub1_ref[...])
    h2 = jnp.maximum(h2, 0.0)
    o = (jnp.dot(h2.astype(compute_dtype), uw2_ref[...],
                 preferred_element_type=f32) + ub2_ref[...])
    out_ref[...] = o.astype(out_ref.dtype)


# ------------------------------ module wrapper ------------------------------
def init_graph_conv_params(key, in_dim, out_dim):
  """Same parameter shapes / init style as the PyTorch module."""
  def linear(k, fan_in, fan_out):
    kw, kb = jax.random.split(k)
    bound = 1.0 / jnp.sqrt(fan_in)
    w = jax.random.uniform(kw, (fan_in, fan_out), jnp.float32, -bound, bound)
    b = jax.random.uniform(kb, (1, fan_out), jnp.float32, -bound, bound)
    return w, b

  k1, k2, k3, k4 = jax.random.split(key, 4)
  mw1, mb1 = linear(k1, in_dim * 3, out_dim)        # message_mlp[0]
  mw2, mb2 = linear(k2, out_dim, out_dim)           # message_mlp[2]
  uw1, ub1 = linear(k3, in_dim + out_dim, out_dim)  # update_mlp[0]
  uw2, ub2 = linear(k4, out_dim, out_dim)           # update_mlp[2]
  return dict(mw1=mw1, mb1=mb1, mw2=mw2, mb2=mb2,
              uw1=uw1, ub1=ub1, uw2=uw2, ub2=ub2)


def graph_conv_layer(params, x, edge_index, edge_attr, *,
                     tile_n=128, tile_e=256,
                     compute_dtype=jnp.bfloat16,
                     max_chunks_per_tile=None):
  """Pallas implementation of GraphConvLayer.forward.

  compute_dtype: dtype fed to the MXU dots (fp32 accumulation always).
    bf16 is the right choice on v5e/v6e/v7x (all MXUs natively consume bf16);
    VPU math stays fp32.  Pass jnp.float32 for bit-tight numerics.
  tile_e: tune to ~tile_n * average_degree (rounded to 128) to minimize
    chunk-boundary waste; 256 suits low-degree molecular graphs.
  max_chunks_per_tile: optional STATIC upper bound on edge chunks covering any
    node tile's CSR range (e.g. ceil(tile_n*max_degree/tile_e)+1).  Must be a
    true upper bound.  Default: worst case cdiv(E_pad, tile_e) -- static, so
    there is no device->host sync and no per-graph recompile.
  """
  N, in_dim = x.shape
  E = edge_index.shape[1]
  if E == 0:                              # matches the PyTorch early return
    return x
  out_dim = params["mw2"].shape[1]

  row = edge_index[0].astype(jnp.int32)
  col = edge_index[1].astype(jnp.int32)

  # --- glue: pad / truncate edge_attr to in_dim (matches the PyTorch branch)
  ea = edge_attr
  if ea.shape[1] != in_dim:
    ea = ea[:, :min(ea.shape[1], in_dim)]
    if ea.shape[1] < in_dim:
      ea = jnp.concatenate(
          [ea, jnp.zeros((E, in_dim - ea.shape[1]), ea.dtype)], axis=1)

  # --- glue: CSR bucketing - sort edges by destination node ---
  order = jnp.argsort(col)
  row_s, col_s, ea_s = row[order], col[order], ea[order]

  # --- padded, lane-dense sizes (feature dims -> multiples of 128) ---
  # (For production layers with out_dim >= 128 on v6e/v7x, padding out to a
  #  multiple of 256 fills the 2x256x256 MXU columns; 128 is right for v5e and
  #  for narrow layers like this one.)
  in_p = _round_up(in_dim, 128)
  out_p = _round_up(out_dim, 128)
  tile_n = _round_up(min(tile_n, _round_up(N, 8)), 8)
  tile_e = _round_up(min(tile_e, _round_up(E, 128)), 128)
  N_pad = _round_up(N, tile_n)
  E_pad = _round_up(E, tile_e)
  n_node_tiles = N_pad // tile_n          # keep even for v7x 2-TC sharding
  n_edge_chunks = E_pad // tile_e

  cd = compute_dtype

  # node features: pad rows/lanes, then cast to compute_dtype BEFORE the
  # gathers so the [E, in_p] gathered intermediates are half-width in HBM.
  x_cd = jnp.pad(x, ((0, N_pad - N), (0, in_p - in_dim))).astype(cd)
  ea_cd = jnp.pad(ea_s, ((0, 0), (0, in_p - in_dim))).astype(cd)

  # endpoint feature gather (data-dependent -> XLA glue; see TODO at top),
  # fused into ONE [E_pad, 3*in_p] edge-feature array: x[row] | x[col] | ea.
  edge_feat = jnp.concatenate([x_cd[row_s], x_cd[col_s], ea_cd], axis=1)
  e_extra = E_pad - E
  edge_feat = jnp.pad(edge_feat, ((0, e_extra), (0, 0)))
  # sentinel col = N_pad never matches any node id
  col_pad = jnp.pad(col_s, (0, e_extra),
                    constant_values=N_pad).reshape(1, E_pad)

  # --- per-node-tile CSR chunk ranges (scalar-prefetched into SMEM) ---
  tile_lo = jnp.arange(n_node_tiles, dtype=jnp.int32) * tile_n
  tile_hi = tile_lo + tile_n
  e_lo = jnp.searchsorted(col_s, tile_lo, side="left").astype(jnp.int32)
  e_hi = jnp.searchsorted(col_s, tile_hi, side="left").astype(jnp.int32)
  chunk_start = jnp.minimum(e_lo // tile_e, n_edge_chunks - 1).astype(jnp.int32)
  n_chunks = jnp.where(e_hi > e_lo,
                       (e_hi + tile_e - 1) // tile_e - e_lo // tile_e,
                       0).astype(jnp.int32)

  # STATIC bound on the inner (reduction) grid axis: no host sync, no
  # per-graph recompile.  (For very degree-skewed graphs a flattened
  # single-axis grid over edge chunks would avoid the skipped-step overhead.)
  if max_chunks_per_tile is None:
    max_chunks = n_edge_chunks
  else:
    max_chunks = max(1, min(int(max_chunks_per_tile), n_edge_chunks))

  # --- weights: stacked / split first layers, zero-padded lane-dense ---
  def pad2(w, r, c):
    return jnp.pad(w, ((0, r - w.shape[0]), (0, c - w.shape[1])))

  mw1, uw1 = params["mw1"], params["uw1"]
  w_msg1 = jnp.concatenate([pad2(mw1[:in_dim], in_p, out_p),
                            pad2(mw1[in_dim:2 * in_dim], in_p, out_p),
                            pad2(mw1[2 * in_dim:], in_p, out_p)], axis=0)
  mb1 = pad2(params["mb1"], 1, out_p)
  mw2 = pad2(params["mw2"], out_p, out_p)
  mb2 = pad2(params["mb2"], 1, out_p)
  uw_x = pad2(uw1[:in_dim], in_p, out_p)
  uw_a = pad2(uw1[in_dim:], out_p, out_p)
  ub1 = pad2(params["ub1"], 1, out_p)
  uw2 = pad2(params["uw2"], out_p, out_p)
  ub2 = pad2(params["ub2"], 1, out_p)

  # cast the MXU weight operands; biases / accumulators stay fp32
  w_msg1, mw2, uw_x, uw_a, uw2 = (
      t.astype(cd) for t in (w_msg1, mw2, uw_x, uw_a, uw2))

  # --- index maps (receive the scalar-prefetch refs positionally) ---
  def edge_map(i, j, cs, nc):
    # clamp past-the-end chunks to the last valid one -> no re-DMA, masked out
    return (cs[i] + jnp.minimum(j, jnp.maximum(nc[i] - 1, 0)), 0)

  def col_map(i, j, cs, nc):
    return (0, cs[i] + jnp.minimum(j, jnp.maximum(nc[i] - 1, 0)))

  node_map = lambda i, j, cs, nc: (i, 0)
  const_map = lambda i, j, cs, nc: (0, 0)

  kernel = functools.partial(_graph_conv_kernel, tile_n=tile_n,
                             tile_e=tile_e, compute_dtype=cd)

  # VMEM footprint at the default tiles is ~1-2 MiB (well under the default
  # scoped limit on all generations, including v7x).  For much wider layers,
  # add pipeline_mode=pl.Buffered(1) to the const_map weight specs (they never
  # change block index) and/or raise vmem_limit_bytes in CompilerParams.
  out = pl.pallas_call(
      kernel,
      out_shape=jax.ShapeDtypeStruct((N_pad, out_p), jnp.float32),
      grid_spec=pltpu.PrefetchScalarGridSpec(
          num_scalar_prefetch=2,
          grid=(n_node_tiles, max_chunks),
          in_specs=[
              pl.BlockSpec((tile_e, 3 * in_p), edge_map),   # fused edge feats
              pl.BlockSpec((1, tile_e), col_map),           # dest ids (int32)
              pl.BlockSpec((tile_n, in_p), node_map),       # x node tile
              pl.BlockSpec((3 * in_p, out_p), const_map),   # W_msg1 (src|dst|ea)
              pl.BlockSpec((1, out_p), const_map),          # b_msg1
              pl.BlockSpec((out_p, out_p), const_map),      # W_msg2
              pl.BlockSpec((1, out_p), const_map),          # b_msg2
              pl.BlockSpec((in_p, out_p), const_map),       # W_upd_x
              pl.BlockSpec((out_p, out_p), const_map),      # W_upd_agg
              pl.BlockSpec((1, out_p), const_map),          # b_upd1
              pl.BlockSpec((out_p, out_p), const_map),      # W_upd2
              pl.BlockSpec((1, out_p), const_map),          # b_upd2
          ],
          out_specs=pl.BlockSpec((tile_n, out_p), node_map),
          scratch_shapes=[pltpu.VMEM((tile_n, out_p), jnp.float32)],
      ),
      compiler_params=pltpu.CompilerParams(
          dimension_semantics=("parallel", "arbitrary")),
  )(chunk_start, n_chunks, edge_feat, col_pad, x_cd,
    w_msg1, mb1, mw2, mb2, uw_x, uw_a, ub1, uw2, ub2)

  return out[:N, :out_dim]


# ------------------------------ pure-JAX reference ------------------------------
def _reference(params, x, edge_index, edge_attr):
  row, col = edge_index[0], edge_index[1]
  N, in_dim = x.shape
  E = edge_index.shape[1]
  ea = edge_attr
  if ea.shape[1] != in_dim:
    ea = ea[:, :min(ea.shape[1], in_dim)]
    if ea.shape[1] < in_dim:
      ea = jnp.concatenate(
          [ea, jnp.zeros((E, in_dim - ea.shape[1]), ea.dtype)], axis=1)
  feat = jnp.concatenate([x[row], x[col], ea], axis=-1)
  h = jnp.maximum(feat @ params["mw1"] + params["mb1"], 0.0)
  msg = h @ params["mw2"] + params["mb2"]
  agg = jnp.zeros_like(x).at[col].add(msg)
  feat2 = jnp.concatenate([x, agg], axis=-1)
  h2 = jnp.maximum(feat2 @ params["uw1"] + params["ub1"], 0.0)
  return h2 @ params["uw2"] + params["ub2"]


if __name__ == "__main__":
  key = jax.random.PRNGKey(0)
  k_param, k_x, k_ea, k_ei = jax.random.split(key, 4)

  # Small but non-trivial graph: ragged N/E (not tile multiples), multiple
  # node tiles and edge chunks, edge_attr narrower than in_dim.
  N, E = 300, 900
  in_dim = out_dim = 64        # module requires in_dim == out_dim
  edge_attr_dim = 16

  params = init_graph_conv_params(k_param, in_dim, out_dim)
  x = jax.random.normal(k_x, (N, in_dim), jnp.float32)
  edge_attr = jax.random.normal(k_ea, (E, edge_attr_dim), jnp.float32)
  edge_index = jax.random.randint(k_ei, (2, E), 0, N, jnp.int32)

  ref = _reference(params, x, edge_index, edge_attr)

  # fp32 compute path: tight check against the fp32 reference.
  out = graph_conv_layer(params, x, edge_index, edge_attr,
                         compute_dtype=jnp.float32)
  out = jax.block_until_ready(out)
  assert out.shape == (N, out_dim)
  assert jnp.allclose(out, ref, atol=2e-3, rtol=2e-3), "fp32 path mismatch"

  # bf16 MXU fast path (the default, right choice on v5e/v6e/v7x): coarse
  # sanity check only, since the reference is fp32.
  out_bf16 = graph_conv_layer(params, x, edge_index, edge_attr)
  out_bf16 = jax.block_until_ready(out_bf16)
  rel_err = float(jnp.max(jnp.abs(out_bf16 - ref)) /
                  (jnp.max(jnp.abs(ref)) + 1e-6))
  assert rel_err < 0.15, f"bf16 path drifted too far: {rel_err}"

  print("KERNEL_OK")
</pallas_src>

<mosaic_0001>
module attributes {stable_mosaic.version = 11 : i64} {
  func.func @_graph_conv_kernel(%arg0: i32, %arg1: i32, %arg2: memref<3xi32, #tpu.memory_space<smem>>, %arg3: memref<3xi32, #tpu.memory_space<smem>>, %arg4: memref<256x384xf32, #tpu.memory_space<vmem>>, %arg5: memref<1x256xi32, #tpu.memory_space<vmem>>, %arg6: memref<128x128xf32, #tpu.memory_space<vmem>>, %arg7: memref<384x128xf32, #tpu.memory_space<vmem>>, %arg8: memref<1x128xf32, #tpu.memory_space<vmem>>, %arg9: memref<128x128xf32, #tpu.memory_space<vmem>>, %arg10: memref<1x128xf32, #tpu.memory_space<vmem>>, %arg11: memref<128x128xf32, #tpu.memory_space<vmem>>, %arg12: memref<128x128xf32, #tpu.memory_space<vmem>>, %arg13: memref<1x128xf32, #tpu.memory_space<vmem>>, %arg14: memref<128x128xf32, #tpu.memory_space<vmem>>, %arg15: memref<1x128xf32, #tpu.memory_space<vmem>>, %arg16: memref<128x128xf32, #tpu.memory_space<vmem>>, %arg17: memref<128x128xf32, #tpu.memory_space<vmem>>) attributes {dimension_semantics = [#tpu.dimension_semantics<parallel>, #tpu.dimension_semantics<arbitrary>], iteration_bounds = array<i64: 3, 4>, scalar_prefetch = 2 : i64, scratch_operands = 1 : i64, tpu.core_type = #tpu.core_type<tc>, window_params = [{transform_indices = @transform_0, window_bounds = array<i64: 256, 384>}, {transform_indices = @transform_1, window_bounds = array<i64: 1, 256>}, {transform_indices = @transform_2, window_bounds = array<i64: 128, 128>}, {pipeline_mode = #tpu.pipeline_mode<synchronous>, transform_indices = @transform_3, window_bounds = array<i64: 384, 128>}, {pipeline_mode = #tpu.pipeline_mode<synchronous>, transform_indices = @transform_4, window_bounds = array<i64: 1, 128>}, {pipeline_mode = #tpu.pipeline_mode<synchronous>, transform_indices = @transform_5, window_bounds = array<i64: 128, 128>}, {pipeline_mode = #tpu.pipeline_mode<synchronous>, transform_indices = @transform_6, window_bounds = array<i64: 1, 128>}, {pipeline_mode = #tpu.pipeline_mode<synchronous>, transform_indices = @transform_7, window_bounds = array<i64: 128, 128>}, {pipeline_mode = #tpu.pipeline_mode<synchronous>, transform_indices = @transform_8, window_bounds = array<i64: 128, 128>}, {pipeline_mode = #tpu.pipeline_mode<synchronous>, transform_indices = @transform_9, window_bounds = array<i64: 1, 128>}, {pipeline_mode = #tpu.pipeline_mode<synchronous>, transform_indices = @transform_10, window_bounds = array<i64: 128, 128>}, {pipeline_mode = #tpu.pipeline_mode<synchronous>, transform_indices = @transform_11, window_bounds = array<i64: 1, 128>}, {transform_indices = @transform_12, window_bounds = array<i64: 128, 128>}]} {
    %c0_i32 = arith.constant 0 : i32
    %0 = arith.cmpi eq, %arg1, %c0_i32 : i32
    %1 = arith.extui %0 : i1 to i32
    %c0_i32_0 = arith.constant 0 : i32
    %2 = arith.cmpi ne, %1, %c0_i32_0 : i32
    scf.if %2 {
      %cst = arith.constant 0.000000e+00 : f32
      %11 = vector.broadcast %cst : f32 to vector<128x128xf32>
      %c0 = arith.constant 0 : index
      %c0_3 = arith.constant 0 : index
      %12 = vector.load %arg17[%c0, %c0_3] : memref<128x128xf32, #tpu.memory_space<vmem>>, vector<128x128xf32>
      tpu.vector_store %arg17[%c0, %c0_3], %11 {strides = array<i32>} : memref<128x128xf32, #tpu.memory_space<vmem>>, vector<128x128xf32>,
    } else {
    }
    %3 = arith.index_cast %arg0 : i32 to index
    %4 = memref.load %arg3[%3] : memref<3xi32, #tpu.memory_space<smem>>
    %5 = arith.cmpi slt, %arg1, %4 : i32
    %6 = arith.extui %5 : i1 to i32
    %c0_i32_1 = arith.constant 0 : i32
    %7 = arith.cmpi ne, %6, %c0_i32_1 : i32
    scf.if %7 {
      %c0 = arith.constant 0 : index
      %c0_3 = arith.constant 0 : index
      %11 = vector.load %arg4[%c0, %c0_3] : memref<256x384xf32, #tpu.memory_space<vmem>>, vector<256x384xf32>
      %c0_4 = arith.constant 0 : index
      %c0_5 = arith.constant 0 : index
      %12 = vector.load %arg7[%c0_4, %c0_5] : memref<384x128xf32, #tpu.memory_space<vmem>>, vector<384x128xf32>
      %cst = arith.constant dense<0.000000e+00> : vector<256x128xf32>
      %13 = tpu.matmul %11, %12, %cst {dimension_numbers = #tpu.dot_dimension_numbers<[1], [0], [0], [1], [0, 0, 1, 1], [], []>} : vector<256x384xf32>, vector<384x128xf32>, vector<256x128xf32> -> vector<256x128xf32>
      %c0_6 = arith.constant 0 : index
      %c0_7 = arith.constant 0 : index
      %14 = vector.load %arg8[%c0_6, %c0_7] : memref<1x128xf32, #tpu.memory_space<vmem>>, vector<1x128xf32>
      %15 = vector.broadcast %14 : vector<1x128xf32> to vector<256x128xf32>
      %16 = arith.addf %13, %15 : vector<256x128xf32>
      %cst_8 = arith.constant 0.000000e+00 : f32
      %17 = vector.broadcast %cst_8 : f32 to vector<256x128xf32>
      %18 = arith.maximumf %16, %17 : vector<256x128xf32>
      %c0_9 = arith.constant 0 : index
      %c0_10 = arith.constant 0 : index
      %19 = vector.load %arg9[%c0_9, %c0_10] : memref<128x128xf32, #tpu.memory_space<vmem>>, vector<128x128xf32>
      %cst_11 = arith.constant dense<0.000000e+00> : vector<256x128xf32>
      %20 = tpu.matmul %18, %19, %cst_11 {dimension_numbers = #tpu.dot_dimension_numbers<[1], [0], [0], [1], [0, 0, 1, 1], [], []>} : vector<256x128xf32>, vector<128x128xf32>, vector<256x128xf32> -> vector<256x128xf32>
      %c0_12 = arith.constant 0 : index
      %c0_13 = arith.constant 0 : index
      %21 = vector.load %arg10[%c0_12, %c0_13] : memref<1x128xf32, #tpu.memory_space<vmem>>, vector<1x128xf32>
      %22 = vector.broadcast %21 : vector<1x128xf32> to vector<256x128xf32>
      %23 = arith.addf %20, %22 : vector<256x128xf32>
      %24 = tpu.iota {dimensions = array<i32: 0>} : vector<128x256xi32>
      %c128_i32 = arith.constant 128 : i32
      %25 = arith.muli %arg0, %c128_i32 : i32
      %26 = vector.broadcast %25 : i32 to vector<128x256xi32>
      %27 = arith.addi %24, %26 : vector<128x256xi32>
      %c0_14 = arith.constant 0 : index
      %c0_15 = arith.constant 0 : index
      %28 = vector.load %arg5[%c0_14, %c0_15] : memref<1x256xi32, #tpu.memory_space<vmem>>, vector<1x256xi32>
      %29 = vector.broadcast %28 : vector<1x256xi32> to vector<128x256xi32>
      %30 = arith.cmpi eq, %27, %29 : vector<128x256xi32>
      %31 = arith.extui %30 : vector<128x256xi1> to vector<128x256xi32>
      %32 = arith.sitofp %31 : vector<128x256xi32> to vector<128x256xf32>
      %c0_16 = arith.constant 0 : index
      %c0_17 = arith.constant 0 : index
      %33 = vector.load %arg17[%c0_16, %c0_17] : memref<128x128xf32, #tpu.memory_space<vmem>>, vector<128x128xf32>
      %cst_18 = arith.constant dense<0.000000e+00> : vector<128x128xf32>
      %34 = tpu.matmul %32, %23, %cst_18 {dimension_numbers = #tpu.dot_dimension_numbers<[1], [0], [0], [1], [0, 0, 1, 1], [], []>} : vector<128x256xf32>, vector<256x128xf32>, vector<128x128xf32> -> vector<128x128xf32>
      %35 = arith.addf %33, %34 : vector<128x128xf32>
      %c0_19 = arith.constant 0 : index
      %c0_20 = arith.constant 0 : index
      %36 = vector.load %arg17[%c0_19, %c0_20] : memref<128x128xf32, #tpu.memory_space<vmem>>, vector<128x128xf32>
      tpu.vector_store %arg17[%c0_19, %c0_20], %35 {strides = array<i32>} : memref<128x128xf32, #tpu.memory_space<vmem>>, vector<128x128xf32>,
    } else {
    }
    %c3_i32 = arith.constant 3 : i32
    %8 = arith.cmpi eq, %arg1, %c3_i32 : i32
    %9 = arith.extui %8 : i1 to i32
    %c0_i32_2 = arith.constant 0 : i32
    %10 = arith.cmpi ne, %9, %c0_i32_2 : i32
    scf.if %10 {
      %c0 = arith.constant 0 : index
      %c0_3 = arith.constant 0 : index
      %11 = vector.load %arg6[%c0, %c0_3] : memref<128x128xf32, #tpu.memory_space<vmem>>, vector<128x128xf32>
      %c0_4 = arith.constant 0 : index
      %c0_5 = arith.constant 0 : index
      %12 = vector.load %arg11[%c0_4, %c0_5] : memref<128x128xf32, #tpu.memory_space<vmem>>, vector<128x128xf32>
      %cst = arith.constant dense<0.000000e+00> : vector<128x128xf32>
      %13 = tpu.matmul %11, %12, %cst {dimension_numbers = #tpu.dot_dimension_numbers<[1], [0], [0], [1], [0, 0, 1, 1], [], []>} : vector<128x128xf32>, vector<128x128xf32>, vector<128x128xf32> -> vector<128x128xf32>
      %c0_6 = arith.constant 0 : index
      %c0_7 = arith.constant 0 : index
      %14 = vector.load %arg17[%c0_6, %c0_7] : memref<128x128xf32, #tpu.memory_space<vmem>>, vector<128x128xf32>
      %c0_8 = arith.constant 0 : index
      %c0_9 = arith.constant 0 : index
      %15 = vector.load %arg12[%c0_8, %c0_9] : memref<128x128xf32, #tpu.memory_space<vmem>>, vector<128x128xf32>
      %cst_10 = arith.constant dense<0.000000e+00> : vector<128x128xf32>
      %16 = tpu.matmul %14, %15, %cst_10 {dimension_numbers = #tpu.dot_dimension_numbers<[1], [0], [0], [1], [0, 0, 1, 1], [], []>} : vector<128x128xf32>, vector<128x128xf32>, vector<128x128xf32> -> vector<128x128xf32>
      %17 = arith.addf %13, %16 : vector<128x128xf32>
      %c0_11 = arith.constant 0 : index
      %c0_12 = arith.constant 0 : index
      %18 = vector.load %arg13[%c0_11, %c0_12] : memref<1x128xf32, #tpu.memory_space<vmem>>, vector<1x128xf32>
      %19 = vector.broadcast %18 : vector<1x128xf32> to vector<128x128xf32>
      %20 = arith.addf %17, %19 : vector<128x128xf32>
      %cst_13 = arith.constant 0.000000e+00 : f32
      %21 = vector.broadcast %cst_13 : f32 to vector<128x128xf32>
      %22 = arith.maximumf %20, %21 : vector<128x128xf32>
      %c0_14 = arith.constant 0 : index
      %c0_15 = arith.constant 0 : index
      %23 = vector.load %arg14[%c0_14, %c0_15] : memref<128x128xf32, #tpu.memory_space<vmem>>, vector<128x128xf32>
      %cst_16 = arith.constant dense<0.000000e+00> : vector<128x128xf32>
      %24 = tpu.matmul %22, %23, %cst_16 {dimension_numbers = #tpu.dot_dimension_numbers<[1], [0], [0], [1], [0, 0, 1, 1], [], []>} : vector<128x128xf32>, vector<128x128xf32>, vector<128x128xf32> -> vector<128x128xf32>
      %c0_17 = arith.constant 0 : index
      %c0_18 = arith.constant 0 : index
      %25 = vector.load %arg15[%c0_17, %c0_18] : memref<1x128xf32, #tpu.memory_space<vmem>>, vector<1x128xf32>
      %26 = vector.broadcast %25 : vector<1x128xf32> to vector<128x128xf32>
      %27 = arith.addf %24, %26 : vector<128x128xf32>
      %c0_19 = arith.constant 0 : index
      %c0_20 = arith.constant 0 : index
      %28 = vector.load %arg16[%c0_19, %c0_20] : memref<128x128xf32, #tpu.memory_space<vmem>>, vector<128x128xf32>
      tpu.vector_store %arg16[%c0_19, %c0_20], %27 {strides = array<i32>} : memref<128x128xf32, #tpu.memory_space<vmem>>, vector<128x128xf32>,
    } else {
    }
    return
  }
  func.func @transform_0(%arg0: i32, %arg1: i32, %arg2: memref<3xi32, #tpu.memory_space<smem>>, %arg3: memref<3xi32, #tpu.memory_space<smem>>) -> (i32, i32) {
    %0 = arith.index_cast %arg0 : i32 to index
    %1 = memref.load %arg2[%0] : memref<3xi32, #tpu.memory_space<smem>>
    %2 = arith.index_cast %arg0 : i32 to index
    %3 = memref.load %arg3[%2] : memref<3xi32, #tpu.memory_space<smem>>
    %c1_i32 = arith.constant 1 : i32
    %4 = arith.subi %3, %c1_i32 : i32
    %c0_i32 = arith.constant 0 : i32
    %5 = arith.maxsi %4, %c0_i32 : i32
    %6 = arith.minsi %arg1, %5 : i32
    %7 = arith.addi %1, %6 : i32
    %c0_i32_0 = arith.constant 0 : i32
    %c0_i32_1 = arith.constant 0 : i32
    return %7, %c0_i32_0 : i32, i32
  }
  func.func @transform_1(%arg0: i32, %arg1: i32, %arg2: memref<3xi32, #tpu.memory_space<smem>>, %arg3: memref<3xi32, #tpu.memory_space<smem>>) -> (i32, i32) {
    %0 = arith.index_cast %arg0 : i32 to index
    %1 = memref.load %arg2[%0] : memref<3xi32, #tpu.memory_space<smem>>
    %2 = arith.index_cast %arg0 : i32 to index
    %3 = memref.load %arg3[%2] : memref<3xi32, #tpu.memory_space<smem>>
    %c1_i32 = arith.constant 1 : i32
    %4 = arith.subi %3, %c1_i32 : i32
    %c0_i32 = arith.constant 0 : i32
    %5 = arith.maxsi %4, %c0_i32 : i32
    %6 = arith.minsi %arg1, %5 : i32
    %7 = arith.addi %1, %6 : i32
    %c0_i32_0 = arith.constant 0 : i32
    %c0_i32_1 = arith.constant 0 : i32
    return %c0_i32_0, %7 : i32, i32
  }
  func.func @transform_2(%arg0: i32, %arg1: i32, %arg2: memref<3xi32, #tpu.memory_space<smem>>, %arg3: memref<3xi32, #tpu.memory_space<smem>>) -> (i32, i32) {
    %c0_i32 = arith.constant 0 : i32
    %c0_i32_0 = arith.constant 0 : i32
    return %arg0, %c0_i32 : i32, i32
  }
  func.func @transform_3(%arg0: i32, %arg1: i32, %arg2: memref<3xi32, #tpu.memory_space<smem>>, %arg3: memref<3xi32, #tpu.memory_space<smem>>) -> (i32, i32) {
    %c0_i32 = arith.constant 0 : i32
    %c0_i32_0 = arith.constant 0 : i32
    %c0_i32_1 = arith.constant 0 : i32
    return %c0_i32, %c0_i32_0 : i32, i32
  }
  func.func @transform_4(%arg0: i32, %arg1: i32, %arg2: memref<3xi32, #tpu.memory_space<smem>>, %arg3: memref<3xi32, #tpu.memory_space<smem>>) -> (i32, i32) {
    %c0_i32 = arith.constant 0 : i32
    %c0_i32_0 = arith.constant 0 : i32
    %c0_i32_1 = arith.constant 0 : i32
    return %c0_i32, %c0_i32_0 : i32, i32
  }
  func.func @transform_5(%arg0: i32, %arg1: i32, %arg2: memref<3xi32, #tpu.memory_space<smem>>, %arg3: memref<3xi32, #tpu.memory_space<smem>>) -> (i32, i32) {
    %c0_i32 = arith.constant 0 : i32
    %c0_i32_0 = arith.constant 0 : i32
    %c0_i32_1 = arith.constant 0 : i32
    return %c0_i32, %c0_i32_0 : i32, i32
  }
  func.func @transform_6(%arg0: i32, %arg1: i32, %arg2: memref<3xi32, #tpu.memory_space<smem>>, %arg3: memref<3xi32, #tpu.memory_space<smem>>) -> (i32, i32) {
    %c0_i32 = arith.constant 0 : i32
    %c0_i32_0 = arith.constant 0 : i32
    %c0_i32_1 = arith.constant 0 : i32
    return %c0_i32, %c0_i32_0 : i32, i32
  }
  func.func @transform_7(%arg0: i32, %arg1: i32, %arg2: memref<3xi32, #tpu.memory_space<smem>>, %arg3: memref<3xi32, #tpu.memory_space<smem>>) -> (i32, i32) {
    %c0_i32 = arith.constant 0 : i32
    %c0_i32_0 = arith.constant 0 : i32
    %c0_i32_1 = arith.constant 0 : i32
    return %c0_i32, %c0_i32_0 : i32, i32
  }
  func.func @transform_8(%arg0: i32, %arg1: i32, %arg2: memref<3xi32, #tpu.memory_space<smem>>, %arg3: memref<3xi32, #tpu.memory_space<smem>>) -> (i32, i32) {
    %c0_i32 = arith.constant 0 : i32
    %c0_i32_0 = arith.constant 0 : i32
    %c0_i32_1 = arith.constant 0 : i32
    return %c0_i32, %c0_i32_0 : i32, i32
  }
  func.func @transform_9(%arg0: i32, %arg1: i32, %arg2: memref<3xi32, #tpu.memory_space<smem>>, %arg3: memref<3xi32, #tpu.memory_space<smem>>) -> (i32, i32) {
    %c0_i32 = arith.constant 0 : i32
    %c0_i32_0 = arith.constant 0 : i32
    %c0_i32_1 = arith.constant 0 : i32
    return %c0_i32, %c0_i32_0 : i32, i32
  }
  func.func @transform_10(%arg0: i32, %arg1: i32, %arg2: memref<3xi32, #tpu.memory_space<smem>>, %arg3: memref<3xi32, #tpu.memory_space<smem>>) -> (i32, i32) {
    %c0_i32 = arith.constant 0 : i32
    %c0_i32_0 = arith.constant 0 : i32
    %c0_i32_1 = arith.constant 0 : i32
    return %c0_i32, %c0_i32_0 : i32, i32
  }
  func.func @transform_11(%arg0: i32, %arg1: i32, %arg2: memref<3xi32, #tpu.memory_space<smem>>, %arg3: memref<3xi32, #tpu.memory_space<smem>>) -> (i32, i32) {
    %c0_i32 = arith.constant 0 : i32
    %c0_i32_0 = arith.constant 0 : i32
    %c0_i32_1 = arith.constant 0 : i32
    return %c0_i32, %c0_i32_0 : i32, i32
  }
  func.func @transform_12(%arg0: i32, %arg1: i32, %arg2: memref<3xi32, #tpu.memory_space<smem>>, %arg3: memref<3xi32, #tpu.memory_space<smem>>) -> (i32, i32) {
    %c0_i32 = arith.constant 0 : i32
    %c0_i32_0 = arith.constant 0 : i32
    return %arg0, %c0_i32 : i32, i32
  }
}

</mosaic_0001>

<llo_original>
// kernel: tpu_custom_call.1
$region0: #{tpu_custom_call.1}
  #allocation0 [shape = 'u32[]', space=smem, size = 0x4, offset = 0x4, fixed_abs, tag = 'smem constant byte address 0x4 - core index']
  #allocation1 [shape = 'u32[72,128]{1,0:T(1,128)}', space=vmem, size = 0x9000, scoped, tag = 'internal scratch']
  #allocation2 [shape = 'f32[128,128]{1,0:T(8,128)}', space=vmem, size = 0x10000, scoped, tag = 'scratch operand']
  #allocation3 [shape = 's32[1]{0}', space=sflag, size = 0x4, scoped, tag = 'scoped memory for tpu_custom_call.1']
  #allocation4 [shape = 'u8[512]{0}', space=smem, size = 0x200, scoped, tag = 'prefetched SMEM operand 0']
  #allocation5 [shape = 'u8[512]{0}', space=smem, size = 0x200, scoped, tag = 'prefetched SMEM operand 1']
  %s0 = inlined_call_operand.hbm [shape: s32[3], index: 0, kind: input, shape index: {}]
  %s1 = inlined_call_operand.hbm [shape: s32[3], index: 1, kind: input, shape index: {}]
  %s2 = inlined_call_operand.hbm [shape: f32[1024,384], index: 2, kind: input, shape index: {}]
  %s3 = inlined_call_operand.hbm [shape: s32[1,1024], index: 3, kind: input, shape index: {}]
  %s4 = inlined_call_operand.hbm [shape: f32[384,128], index: 4, kind: input, shape index: {}]
  %s5 = inlined_call_operand.hbm [shape: f32[384,128], index: 5, kind: input, shape index: {}]
  %s6 = inlined_call_operand.hbm [shape: f32[1,128], index: 6, kind: input, shape index: {}]
  %s7 = inlined_call_operand.hbm [shape: f32[128,128], index: 7, kind: input, shape index: {}]
  %s8 = inlined_call_operand.hbm [shape: f32[1,128], index: 8, kind: input, shape index: {}]
  %s9 = inlined_call_operand.hbm [shape: f32[128,128], index: 9, kind: input, shape index: {}]
  %s10 = inlined_call_operand.hbm [shape: f32[128,128], index: 10, kind: input, shape index: {}]
  %s11 = inlined_call_operand.hbm [shape: f32[1,128], index: 11, kind: input, shape index: {}]
  %s12 = inlined_call_operand.hbm [shape: f32[128,128], index: 12, kind: input, shape index: {}]
  %s13 = inlined_call_operand.hbm [shape: f32[1,128], index: 13, kind: input, shape index: {}]
  %s14 = inlined_call_operand.hbm [shape: f32[384,128], index: 14, kind: output, shape index: {}]
  %s15 = sld [smem:[#allocation0]]
  $region141: #{tpu_custom_call.1} parent=0
    _
  %s17 = ssub.s32 1, %s15
  %s18 = scalar_select 0, %s17, %s15
  %s20 = sshll.u32 %s0, 4
  %s21 = int_to_ptr.hbm [resolvable:$true] %s20
  %23 = dma.hbm_to_smem %s21, 16, [#allocation4], [#allocation3]
  %s25 = sshll.u32 %s1, 4
  %s26 = int_to_ptr.hbm [resolvable:$true] %s25
  %28 = dma.hbm_to_smem %s26, 16, [#allocation5], [#allocation3]
  %30 = dma.done [#allocation3], 32
  %31 = sfence
  $region1: #{tpu_custom_call.1} parent=0
    #allocation6 [shape = 'u8[786432]{0}', space=vmem, size = 0xc0000, scoped, tag = 'input window, operand 2']
    #allocation7 [shape = 's32[2]{0}', space=sflag, size = 0x8, scoped, tag = 'scoped memory for tpu_custom_call.1']
    #allocation8 [shape = 's32[2]{0}', space=sflag, size = 0x8, scoped, tag = 'scoped memory for tpu_custom_call.1']
    #allocation9 [shape = 'u8[2048]{0}', space=vmem, size = 0x800, scoped, tag = 'input window, operand 3']
    #allocation10 [shape = 's32[2]{0}', space=sflag, size = 0x8, scoped, tag = 'scoped memory for tpu_custom_call.1']
    #allocation11 [shape = 'u8[131072]{0}', space=vmem, size = 0x20000, scoped, tag = 'input window, operand 4']
    #allocation12 [shape = 'u8[196608]{0}', space=vmem, size = 0x30000, scoped, tag = 'input window, operand 5, single buffered']
    #allocation13 [shape = 's32[1]{0}', space=sflag, size = 0x4, scoped, tag = 'scoped memory for tpu_custom_call.1']
    #allocation14 [shape = 'u8[512]{0}', space=vmem, size = 0x400, scoped, tag = 'input window, operand 6, single buffered']
    #allocation15 [shape = 'u8[65536]{0}', space=vmem, size = 0x10000, scoped, tag = 'input window, operand 7, single buffered']
    #allocation16 [shape = 's32[1]{0}', space=sflag, size = 0x4, scoped, tag = 'scoped memory for tpu_custom_call.1']
    #allocation17 [shape = 'u8[512]{0}', space=vmem, size = 0x400, scoped, tag = 'input window, operand 8, single buffered']
    #allocation18 [shape = 'u8[65536]{0}', space=vmem, size = 0x10000, scoped, tag = 'input window, operand 9, single buffered']
    #allocation19 [shape = 's32[1]{0}', space=sflag, size = 0x4, scoped, tag = 'scoped memory for tpu_custom_call.1']
    #allocation20 [shape = 'u8[65536]{0}', space=vmem, size = 0x10000, scoped, tag = 'input window, operand 10, single buffered']
    #allocation21 [shape = 'u8[512]{0}', space=vmem, size = 0x400, scoped, tag = 'input window, operand 11, single buffered']
    #allocation22 [shape = 's32[1]{0}', space=sflag, size = 0x4, scoped, tag = 'scoped memory for tpu_custom_call.1']
    #allocation23 [shape = 'u8[65536]{0}', space=vmem, size = 0x10000, scoped, tag = 'input window, operand 12, single buffered']
    #allocation24 [shape = 'u8[512]{0}', space=vmem, size = 0x400, scoped, tag = 'input window, operand 13, single buffered']
    #allocation25 [shape = 's32[1]{0}', space=sflag, size = 0x4, scoped, tag = 'scoped memory for tpu_custom_call.1']
    #allocation26 [shape = 'u8[131072]{0}', space=vmem, size = 0x20000, scoped, tag = 'output window, operand 0']
    %32 = vsyncpa [#allocation7], 0
    %s33 = scalar_lea.sflag [#allocation7], 1
    %34 = vsyncpa %s33, 0
    %35 = vsyncpa [#allocation10], 0
    %s36 = scalar_lea.sflag [#allocation10], 1
    %37 = vsyncpa %s36, 0
    %38 = vsyncpa [#allocation13], 0
    %39 = vsyncpa [#allocation16], 0
    %40 = vsyncpa [#allocation19], 0
    %41 = vsyncpa [#allocation22], 0
    %42 = vsyncpa [#allocation25], 0
    %43 = vsyncpa [#allocation8], 0
    %s44 = scalar_lea.sflag [#allocation8], 1
    %45 = vsyncpa %s44, 0
    loop: start=0, step=1, limit=14
    $region2: #{tpu_custom_call.1} parent=1 // loop_pre_header
      _
    $region3: #{tpu_custom_call.1} parent=1 // loop_header
      %s47 = sphi 0, %s51
      %p48 = scmp.ge.s32.totalorder %s47, 14
      %s54 = sphi 0, %s66
      %s55 = sphi 0, %s62
      %s56 = sphi 0, %s54
      %s57 = sphi 0, %s55
      %s58 = sphi 0, %s56
      %s59 = sphi 0, %s57
      %s85 = sphi 0, %s87
      %s88 = sphi 0, %s85
      %s89 = sphi 0, %s88
      %s105 = sphi 0, %s89
      %s127 = sphi 0, %s129
      %s130 = sphi 0, %s127
      %s131 = sphi 0, %s130
      %s147 = sphi 0, %s131
      %s153 = sphi 0, %s155
      %s156 = sphi 0, %s153
      %s157 = sphi 0, %s156
      %s173 = sphi 0, %s157
      %s177 = sphi 0, %s177
      %s179 = sphi 0, %s177
      %s180 = sphi 0, %s179
      %s194 = sphi 0, %s180
      %s198 = sphi 0, %s198
      %s200 = sphi 0, %s198
      %s201 = sphi 0, %s200
      %s215 = sphi 0, %s201
      %s219 = sphi 0, %s219
      %s221 = sphi 0, %s219
      %s222 = sphi 0, %s221
      %s236 = sphi 0, %s222
      %s240 = sphi 0, %s240
      %s242 = sphi 0, %s240
      %s243 = sphi 0, %s242
      %s257 = sphi 0, %s243
      %s261 = sphi 0, %s261
      %s263 = sphi 0, %s261
      %s264 = sphi 0, %s263
      %s278 = sphi 0, %s264
      %s282 = sphi 0, %s282
      %s284 = sphi 0, %s282
      %s285 = sphi 0, %s284
      %s299 = sphi 0, %s285
      %s303 = sphi 0, %s303
      %s305 = sphi 0, %s303
      %s306 = sphi 0, %s305
      %s320 = sphi 0, %s306
      %s324 = sphi 0, %s324
      %s326 = sphi 0, %s324
      %s327 = sphi 0, %s326
      %s341 = sphi 0, %s327
      %s345 = sphi 0, %s345
      %s347 = sphi 0, %s345
      %s348 = sphi 0, %s347
      %s362 = sphi 0, %s348
      %s368 = sphi 0, %s370
      %s371 = sphi 0, %s368
      %s372 = sphi 0, %s371
      %s388 = sphi 0, %s372
    $region4: #{tpu_custom_call.1} parent=1 // loop_header_branch
      %50 = sbr.rel (%p48) target = $region8
    $region5: #{tpu_custom_call.1} parent=1 // loop_body
      %s52 = ssub.s32 %s47, 1
      %s53 = ssub.s32 %s47, 2
      %s60 = sadd.s32 1, %s55
      %p61 = scmp.ge.s32.totalorder %s60, 4
      %s62 = scalar_select %p61, 0, %s60
      %s63 = sadd.s32 1, %s54
      %s64 = scalar_select %p61, %s63, %s54
      %p65 = scmp.ge.s32.totalorder %s64, 3
      %s66 = scalar_select %p65, 0, %s64
      %s67 = sld [smem:[#allocation4 + %s54]]
      %s68 = sld [smem:[#allocation5 + %s54]]
      %s69 = ssub.s32 %s68, 1
      %p70 = scmp.gt.s32.totalorder %s69, 0
      %s71 = scalar_select %p70, %s69, 0
      %p72 = scmp.lt.s32.totalorder %s55, %s71
      %s73 = scalar_select %p72, %s55, %s71
      %s74 = sadd.s32 %s67, %s73
      %s75 = sld [smem:[#allocation4 + %s66]]
      %s76 = sld [smem:[#allocation5 + %s66]]
      %s77 = ssub.s32 %s76, 1
      %p78 = scmp.gt.s32.totalorder %s77, 0
      %s79 = scalar_select %p78, %s77, 0
      %p80 = scmp.lt.s32.totalorder %s62, %s79
      %s81 = scalar_select %p80, %s62, %s79
      %s82 = sadd.s32 %s75, %s81
      %s83 = ssub.s32 %s74, %s82
      %p84 = scmp.eq.s32.totalorder %s83, 0
      %s86 = sadd.s32 %s85, 1
      %s87 = scalar_select %p84, %s85, %s86
      %p90 = pneg %p84
      %p91 = scmp.eq.s32.totalorder %s47, 11
      %p92 = por %p90, %p91
      %p93 = scmp.ne.s32.totalorder %s85, %s88
      %p94 = scmp.eq.s32.totalorder %s47, 0
      %p95 = por %p93, %p94
      %p96 = scmp.ne.s32.totalorder %s85, %s88
      %p97 = scmp.eq.s32.totalorder %s52, 11
      %p98 = por %p96, %p97
      %p99 = scmp.ne.s32.totalorder %s88, %s89
      %p100 = scmp.eq.s32.totalorder %s52, 0
      %p101 = por %p99, %p100
      %p102 = scmp.ne.s32.totalorder %s88, %s89
      %p103 = scmp.eq.s32.totalorder %s53, 11
      %p104 = por %p102, %p103
      %p106 = scmp.ne.s32.totalorder %s89, %s105
      %p107 = scmp.eq.s32.totalorder %s53, 0
      %p108 = por %p106, %p107
      %s109 = sld [smem:[#allocation4 + %s54]]
      %s110 = sld [smem:[#allocation5 + %s54]]
      %s111 = ssub.s32 %s110, 1
      %p112 = scmp.gt.s32.totalorder %s111, 0
      %s113 = scalar_select %p112, %s111, 0
      %p114 = scmp.lt.s32.totalorder %s55, %s113
      %s115 = scalar_select %p114, %s55, %s113
      %s116 = sadd.s32 %s109, %s115
      %s117 = sld [smem:[#allocation4 + %s66]]
      %s118 = sld [smem:[#allocation5 + %s66]]
      %s119 = ssub.s32 %s118, 1
      %p120 = scmp.gt.s32.totalorder %s119, 0
      %s121 = scalar_select %p120, %s119, 0
      %p122 = scmp.lt.s32.totalorder %s62, %s121
      %s123 = scalar_select %p122, %s62, %s121
      %s124 = sadd.s32 %s117, %s123
      %s125 = ssub.s32 %s116, %s124
      %p126 = scmp.eq.s32.totalorder %s125, 0
      %s128 = sadd.s32 %s127, 1
      %s129 = scalar_select %p126, %s127, %s128
      %p132 = pneg %p126
      %p133 = scmp.eq.s32.totalorder %s47, 11
      %p134 = por %p132, %p133
      %p135 = scmp.ne.s32.totalorder %s127, %s130
      %p136 = scmp.eq.s32.totalorder %s47, 0
      %p137 = por %p135, %p136
      %p138 = scmp.ne.s32.totalorder %s127, %s130
      %p139 = scmp.eq.s32.totalorder %s52, 11
      %p140 = por %p138, %p139
      %p141 = scmp.ne.s32.totalorder %s130, %s131
      %p142 = scmp.eq.s32.totalorder %s52, 0
      %p143 = por %p141, %p142
      %p144 = scmp.ne.s32.totalorder %s130, %s131
      %p145 = scmp.eq.s32.totalorder %s53, 11
      %p146 = por %p144, %p145
      %p148 = scmp.ne.s32.totalorder %s131, %s147
      %p149 = scmp.eq.s32.totalorder %s53, 0
      %p150 = por %p148, %p149
      %s151 = ssub.s32 %s54, %s66
      %p152 = scmp.eq.s32.totalorder %s151, 0
      %s154 = sadd.s32 %s153, 1
      %s155 = scalar_select %p152, %s153, %s154
      %p158 = pneg %p152
      %p159 = scmp.eq.s32.totalorder %s47, 11
      %p160 = por %p158, %p159
      %p161 = scmp.ne.s32.totalorder %s153, %s156
      %p162 = scmp.eq.s32.totalorder %s47, 0
      %p163 = por %p161, %p162
      %p164 = scmp.ne.s32.totalorder %s153, %s156
      %p165 = scmp.eq.s32.totalorder %s52, 11
      %p166 = por %p164, %p165
      %p167 = scmp.ne.s32.totalorder %s156, %s157
      %p168 = scmp.eq.s32.totalorder %s52, 0
      %p169 = por %p167, %p168
      %p170 = scmp.ne.s32.totalorder %s156, %s157
      %p171 = scmp.eq.s32.totalorder %s53, 11
      %p172 = por %p170, %p171
      %p174 = scmp.ne.s32.totalorder %s157, %s173
      %p175 = scmp.eq.s32.totalorder %s53, 0
      %p176 = por %p174, %p175
      %s178 = sadd.s32 %s177, 1
      %p181 = scmp.eq.s32.totalorder %s47, 11
      %p182 = scmp.ne.s32.totalorder %s177, %s179
      %p183 = scmp.eq.s32.totalorder %s47, 0
      %p184 = por %p182, %p183
      %p185 = scmp.ne.s32.totalorder %s177, %s179
      %p186 = scmp.eq.s32.totalorder %s52, 11
      %p187 = por %p185, %p186
      %p188 = scmp.ne.s32.totalorder %s179, %s180
      %p189 = scmp.eq.s32.totalorder %s52, 0
      %p190 = por %p188, %p189
      %p191 = scmp.ne.s32.totalorder %s179, %s180
      %p192 = scmp.eq.s32.totalorder %s53, 11
      %p193 = por %p191, %p192
      %p195 = scmp.ne.s32.totalorder %s180, %s194
      %p196 = scmp.eq.s32.totalorder %s53, 0
      %p197 = por %p195, %p196
      %s199 = sadd.s32 %s198, 1
      %p202 = scmp.eq.s32.totalorder %s47, 11
      %p203 = scmp.ne.s32.totalorder %s198, %s200
      %p204 = scmp.eq.s32.totalorder %s47, 0
      %p205 = por %p203, %p204
      %p206 = scmp.ne.s32.totalorder %s198, %s200
      %p207 = scmp.eq.s32.totalorder %s52, 11
      %p208 = por %p206, %p207
      %p209 = scmp.ne.s32.totalorder %s200, %s201
      %p210 = scmp.eq.s32.totalorder %s52, 0
      %p211 = por %p209, %p210
      %p212 = scmp.ne.s32.totalorder %s200, %s201
      %p213 = scmp.eq.s32.totalorder %s53, 11
      %p214 = por %p212, %p213
      %p216 = scmp.ne.s32.totalorder %s201, %s215
      %p217 = scmp.eq.s32.totalorder %s53, 0
      %p218 = por %p216, %p217
      %s220 = sadd.s32 %s219, 1
      %p223 = scmp.eq.s32.totalorder %s47, 11
      %p224 = scmp.ne.s32.totalorder %s219, %s221
      %p225 = scmp.eq.s32.totalorder %s47, 0
      %p226 = por %p224, %p225
      %p227 = scmp.ne.s32.totalorder %s219, %s221
      %p228 = scmp.eq.s32.totalorder %s52, 11
      %p229 = por %p227, %p228
      %p230 = scmp.ne.s32.totalorder %s221, %s222
      %p231 = scmp.eq.s32.totalorder %s52, 0
      %p232 = por %p230, %p231
      %p233 = scmp.ne.s32.totalorder %s221, %s222
      %p234 = scmp.eq.s32.totalorder %s53, 11
      %p235 = por %p233, %p234
      %p237 = scmp.ne.s32.totalorder %s222, %s236
      %p238 = scmp.eq.s32.totalorder %s53, 0
      %p239 = por %p237, %p238
      %s241 = sadd.s32 %s240, 1
      %p244 = scmp.eq.s32.totalorder %s47, 11
      %p245 = scmp.ne.s32.totalorder %s240, %s242
      %p246 = scmp.eq.s32.totalorder %s47, 0
      %p247 = por %p245, %p246
      %p248 = scmp.ne.s32.totalorder %s240, %s242
      %p249 = scmp.eq.s32.totalorder %s52, 11
      %p250 = por %p248, %p249
      %p251 = scmp.ne.s32.totalorder %s242, %s243
      %p252 = scmp.eq.s32.totalorder %s52, 0
      %p253 = por %p251, %p252
      %p254 = scmp.ne.s32.totalorder %s242, %s243
      %p255 = scmp.eq.s32.totalorder %s53, 11
      %p256 = por %p254, %p255
      %p258 = scmp.ne.s32.totalorder %s243, %s257
      %p259 = scmp.eq.s32.totalorder %s53, 0
      %p260 = por %p258, %p259
      %s262 = sadd.s32 %s261, 1
      %p265 = scmp.eq.s32.totalorder %s47, 11
      %p266 = scmp.ne.s32.totalorder %s261, %s263
      %p267 = scmp.eq.s32.totalorder %s47, 0
      %p268 = por %p266, %p267
      %p269 = scmp.ne.s32.totalorder %s261, %s263
      %p270 = scmp.eq.s32.totalorder %s52, 11
      %p271 = por %p269, %p270
      %p272 = scmp.ne.s32.totalorder %s263, %s264
      %p273 = scmp.eq.s32.totalorder %s52, 0
      %p274 = por %p272, %p273
      %p275 = scmp.ne.s32.totalorder %s263, %s264
      %p276 = scmp.eq.s32.totalorder %s53, 11
      %p277 = por %p275, %p276
      %p279 = scmp.ne.s32.totalorder %s264, %s278
      %p280 = scmp.eq.s32.totalorder %s53, 0
      %p281 = por %p279, %p280
      %s283 = sadd.s32 %s282, 1
      %p286 = scmp.eq.s32.totalorder %s47, 11
      %p287 = scmp.ne.s32.totalorder %s282, %s284
      %p288 = scmp.eq.s32.totalorder %s47, 0
      %p289 = por %p287, %p288
      %p290 = scmp.ne.s32.totalorder %s282, %s284
      %p291 = scmp.eq.s32.totalorder %s52, 11
      %p292 = por %p290, %p291
      %p293 = scmp.ne.s32.totalorder %s284, %s285
      %p294 = scmp.eq.s32.totalorder %s52, 0
      %p295 = por %p293, %p294
      %p296 = scmp.ne.s32.totalorder %s284, %s285
      %p297 = scmp.eq.s32.totalorder %s53, 11
      %p298 = por %p296, %p297
      %p300 = scmp.ne.s32.totalorder %s285, %s299
      %p301 = scmp.eq.s32.totalorder %s53, 0
      %p302 = por %p300, %p301
      %s304 = sadd.s32 %s303, 1
      %p307 = scmp.eq.s32.totalorder %s47, 11
      %p308 = scmp.ne.s32.totalorder %s303, %s305
      %p309 = scmp.eq.s32.totalorder %s47, 0
      %p310 = por %p308, %p309
      %p311 = scmp.ne.s32.totalorder %s303, %s305
      %p312 = scmp.eq.s32.totalorder %s52, 11
      %p313 = por %p311, %p312
      %p314 = scmp.ne.s32.totalorder %s305, %s306
      %p315 = scmp.eq.s32.totalorder %s52, 0
      %p316 = por %p314, %p315
      %p317 = scmp.ne.s32.totalorder %s305, %s306
      %p318 = scmp.eq.s32.totalorder %s53, 11
      %p319 = por %p317, %p318
      %p321 = scmp.ne.s32.totalorder %s306, %s320
      %p322 = scmp.eq.s32.totalorder %s53, 0
      %p323 = por %p321, %p322
      %s325 = sadd.s32 %s324, 1
      %p328 = scmp.eq.s32.totalorder %s47, 11
      %p329 = scmp.ne.s32.totalorder %s324, %s326
      %p330 = scmp.eq.s32.totalorder %s47, 0
      %p331 = por %p329, %p330
      %p332 = scmp.ne.s32.totalorder %s324, %s326
      %p333 = scmp.eq.s32.totalorder %s52, 11
      %p334 = por %p332, %p333
      %p335 = scmp.ne.s32.totalorder %s326, %s327
      %p336 = scmp.eq.s32.totalorder %s52, 0
      %p337 = por %p335, %p336
      %p338 = scmp.ne.s32.totalorder %s326, %s327
      %p339 = scmp.eq.s32.totalorder %s53, 11
      %p340 = por %p338, %p339
      %p342 = scmp.ne.s32.totalorder %s327, %s341
      %p343 = scmp.eq.s32.totalorder %s53, 0
      %p344 = por %p342, %p343
      %s346 = sadd.s32 %s345, 1
      %p349 = scmp.eq.s32.totalorder %s47, 11
      %p350 = scmp.ne.s32.totalorder %s345, %s347
      %p351 = scmp.eq.s32.totalorder %s47, 0
      %p352 = por %p350, %p351
      %p353 = scmp.ne.s32.totalorder %s345, %s347
      %p354 = scmp.eq.s32.totalorder %s52, 11
      %p355 = por %p353, %p354
      %p356 = scmp.ne.s32.totalorder %s347, %s348
      %p357 = scmp.eq.s32.totalorder %s52, 0
      %p358 = por %p356, %p357
      %p359 = scmp.ne.s32.totalorder %s347, %s348
      %p360 = scmp.eq.s32.totalorder %s53, 11
      %p361 = por %p359, %p360
      %p363 = scmp.ne.s32.totalorder %s348, %s362
      %p364 = scmp.eq.s32.totalorder %s53, 0
      %p365 = por %p363, %p364
      %s366 = ssub.s32 %s54, %s66
      %p367 = scmp.eq.s32.totalorder %s366, 0
      %s369 = sadd.s32 %s368, 1
      %s370 = scalar_select %p367, %s368, %s369
      %p373 = pneg %p367
      %p374 = scmp.eq.s32.totalorder %s47, 11
      %p375 = por %p373, %p374
      %p376 = scmp.ne.s32.totalorder %s368, %s371
      %p377 = scmp.eq.s32.totalorder %s47, 0
      %p378 = por %p376, %p377
      %p379 = scmp.ne.s32.totalorder %s368, %s371
      %p380 = scmp.eq.s32.totalorder %s52, 11
      %p381 = por %p379, %p380
      %p382 = scmp.ne.s32.totalorder %s371, %s372
      %p383 = scmp.eq.s32.totalorder %s52, 0
      %p384 = por %p382, %p383
      %p385 = scmp.ne.s32.totalorder %s371, %s372
      %p386 = scmp.eq.s32.totalorder %s53, 11
      %p387 = por %p385, %p386
      %p389 = scmp.ne.s32.totalorder %s372, %s388
      %p390 = scmp.eq.s32.totalorder %s53, 0
      %p391 = por %p389, %p390
      %p392 = scmp.le.s32.totalorder 1, %s47
      %p393 = scmp.lt.s32.totalorder %s47, 13
      %p394 = pnand %p392, %p393
      %p395 = pneg %p394
      // Predicated region
      $region9: #{tpu_custom_call.1} parent=5 // pred_check
        _
      $region10: #{tpu_custom_call.1} parent=5 // pred_check_branch
        %397 = sbr.rel (%p394) target = $region12
      $region11: #{tpu_custom_call.1} parent=5 // pred_region
        %s398 = ssub.s32 %s47, 1
        // Predicated region
        $region13: #{tpu_custom_call.1} parent=11 // pred_check
          %p399 = pneg %p190
        $region14: #{tpu_custom_call.1} parent=11 // pred_check_branch
          %401 = sbr.rel (%p399) target = $region16
        $region15: #{tpu_custom_call.1} parent=11 // pred_region
          %403 = vsyncadd [#allocation13], 0
          %s404 = sshll.u32 %s5, 4
          %s405 = int_to_ptr.hbm [resolvable:$true] %s404
          %s406 = sshll.u32 [#allocation12], 4
          %s407 = int_to_ptr.vmem [resolvable:$true] %s406
          %412 = dma.hbm_to_vmem [thread:$0]  %s405, 6144, %s407, [#allocation13], 128, 128, 8
        $region16: #{tpu_custom_call.1} parent=11 // pred_fallthru
          _
        // Predicated region
        $region17: #{tpu_custom_call.1} parent=11 // pred_check
          %p413 = pneg %p211
        $region18: #{tpu_custom_call.1} parent=11 // pred_check_branch
          %415 = sbr.rel (%p413) target = $region20
        $region19: #{tpu_custom_call.1} parent=11 // pred_region
          %417 = vsyncadd [#allocation13], 0
          %s419 = sshll.u32 %s6, 4
          %s420 = int_to_ptr.hbm [resolvable:$true] %s419
          %s421 = sshll.u32 [#allocation14], 4
          %s422 = int_to_ptr.vmem [resolvable:$true] %s421
          %424 = dma.hbm_to_vmem [thread:$0]  %s420, 16, %s422, [#allocation13]
        $region20: #{tpu_custom_call.1} parent=11 // pred_fallthru
          _
        // Predicated region
        $region21: #{tpu_custom_call.1} parent=11 // pred_check
          %p425 = pneg %p232
        $region22: #{tpu_custom_call.1} parent=11 // pred_check_branch
          %427 = sbr.rel (%p425) target = $region24
        $region23: #{tpu_custom_call.1} parent=11 // pred_region
          %429 = vsyncadd [#allocation16], 0
          %s430 = sshll.u32 %s7, 4
          %s431 = int_to_ptr.hbm [resolvable:$true] %s430
          %s432 = sshll.u32 [#allocation15], 4
          %s433 = int_to_ptr.vmem [resolvable:$true] %s432
          %438 = dma.hbm_to_vmem [thread:$0]  %s431, 2048, %s433, [#allocation16], 128, 128, 8
        $region24: #{tpu_custom_call.1} parent=11 // pred_fallthru
          _
        // Predicated region
        $region25: #{tpu_custom_call.1} parent=11 // pred_check
          %p439 = pneg %p253
        $region26: #{tpu_custom_call.1} parent=11 // pred_check_branch
          %441 = sbr.rel (%p439) target = $region28
        $region27: #{tpu_custom_call.1} parent=11 // pred_region
          %443 = vsyncadd [#allocation16], 0
          %s445 = sshll.u32 %s8, 4
          %s446 = int_to_ptr.hbm [resolvable:$true] %s445
          %s447 = sshll.u32 [#allocation17], 4
          %s448 = int_to_ptr.vmem [resolvable:$true] %s447
          %450 = dma.hbm_to_vmem [thread:$0]  %s446, 16, %s448, [#allocation16]
        $region28: #{tpu_custom_call.1} parent=11 // pred_fallthru
          _
        // Predicated region
        $region29: #{tpu_custom_call.1} parent=11 // pred_check
          %p451 = pneg %p274
        $region30: #{tpu_custom_call.1} parent=11 // pred_check_branch
          %453 = sbr.rel (%p451) target = $region32
        $region31: #{tpu_custom_call.1} parent=11 // pred_region
          %455 = vsyncadd [#allocation19], 0
          %s456 = sshll.u32 %s9, 4
          %s457 = int_to_ptr.hbm [resolvable:$true] %s456
          %s458 = sshll.u32 [#allocation18], 4
          %s459 = int_to_ptr.vmem [resolvable:$true] %s458
          %464 = dma.hbm_to_vmem [thread:$0]  %s457, 2048, %s459, [#allocation19], 128, 128, 8
        $region32: #{tpu_custom_call.1} parent=11 // pred_fallthru
          _
        // Predicated region
        $region33: #{tpu_custom_call.1} parent=11 // pred_check
          %p465 = pneg %p295
        $region34: #{tpu_custom_call.1} parent=11 // pred_check_branch
          %467 = sbr.rel (%p465) target = $region36
        $region35: #{tpu_custom_call.1} parent=11 // pred_region
          %469 = vsyncadd [#allocation19], 0
          %s470 = sshll.u32 %s10, 4
          %s471 = int_to_ptr.hbm [resolvable:$true] %s470
          %s472 = sshll.u32 [#allocation20], 4
          %s473 = int_to_ptr.vmem [resolvable:$true] %s472
          %478 = dma.hbm_to_vmem [thread:$0]  %s471, 2048, %s473, [#allocation19], 128, 128, 8
        $region36: #{tpu_custom_call.1} parent=11 // pred_fallthru
          _
        // Predicated region
        $region37: #{tpu_custom_call.1} parent=11 // pred_check
          %p479 = pneg %p316
        $region38: #{tpu_custom_call.1} parent=11 // pred_check_branch
          %481 = sbr.rel (%p479) target = $region40
        $region39: #{tpu_custom_call.1} parent=11 // pred_region
          %483 = vsyncadd [#allocation22], 0
          %s485 = sshll.u32 %s11, 4
          %s486 = int_to_ptr.hbm [resolvable:$true] %s485
          %s487 = sshll.u32 [#allocation21], 4
          %s488 = int_to_ptr.vmem [resolvable:$true] %s487
          %490 = dma.hbm_to_vmem [thread:$0]  %s486, 16, %s488, [#allocation22]
        $region40: #{tpu_custom_call.1} parent=11 // pred_fallthru
          _
        // Predicated region
        $region41: #{tpu_custom_call.1} parent=11 // pred_check
          %p491 = pneg %p337
        $region42: #{tpu_custom_call.1} parent=11 // pred_check_branch
          %493 = sbr.rel (%p491) target = $region44
        $region43: #{tpu_custom_call.1} parent=11 // pred_region
          %495 = vsyncadd [#allocation22], 0
          %s496 = sshll.u32 %s12, 4
          %s497 = int_to_ptr.hbm [resolvable:$true] %s496
          %s498 = sshll.u32 [#allocation23], 4
          %s499 = int_to_ptr.vmem [resolvable:$true] %s498
          %504 = dma.hbm_to_vmem [thread:$0]  %s497, 2048, %s499, [#allocation22], 128, 128, 8
        $region44: #{tpu_custom_call.1} parent=11 // pred_fallthru
          _
        // Predicated region
        $region45: #{tpu_custom_call.1} parent=11 // pred_check
          %p505 = pneg %p358
        $region46: #{tpu_custom_call.1} parent=11 // pred_check_branch
          %507 = sbr.rel (%p505) target = $region48
        $region47: #{tpu_custom_call.1} parent=11 // pred_region
          %509 = vsyncadd [#allocation25], 0
          %s511 = sshll.u32 %s13, 4
          %s512 = int_to_ptr.hbm [resolvable:$true] %s511
          %s513 = sshll.u32 [#allocation24], 4
          %s514 = int_to_ptr.vmem [resolvable:$true] %s513
          %516 = dma.hbm_to_vmem [thread:$0]  %s512, 16, %s514, [#allocation25]
        $region48: #{tpu_custom_call.1} parent=11 // pred_fallthru
          _
      $region12: #{tpu_custom_call.1} parent=5 // pred_fallthru
        _
      %p517 = scmp.lt.s32.totalorder %s47, 12
      // Predicated region
      $region49: #{tpu_custom_call.1} parent=5 // pred_check
        %p518 = pneg %p517
      $region50: #{tpu_custom_call.1} parent=5 // pred_check_branch
        %520 = sbr.rel (%p518) target = $region52
      $region51: #{tpu_custom_call.1} parent=5 // pred_region
        // Predicated region
        $region53: #{tpu_custom_call.1} parent=51 // pred_check
          %p521 = pneg %p95
        $region54: #{tpu_custom_call.1} parent=51 // pred_check_branch
          %523 = sbr.rel (%p521) target = $region56
        $region55: #{tpu_custom_call.1} parent=51 // pred_region
          %s524 = sand.u32 %s85, 1
          %s525 = scalar_lea.sflag [#allocation7], %s524
          %s526 = sand.u32 %s85, 1
          %s527 = smul.addr %s526, 768
          %s528 = scalar_lea.vmem [#allocation6], %s527
          %s529 = sld [smem:[#allocation4 + %s54]]
          %s530 = sld [smem:[#allocation5 + %s54]]
          %s531 = ssub.s32 %s530, 1
          %p532 = scmp.gt.s32.totalorder %s531, 0
          %s533 = scalar_select %p532, %s531, 0
          %p534 = scmp.lt.s32.totalorder %s55, %s533
          %s535 = scalar_select %p534, %s55, %s533
          %s536 = sadd.s32 %s529, %s535
          %s537 = smul.u32 32, %s536
          %539 = vsyncadd %s525, 0
          %s540 = smul.addr %s537, 3
          %s541 = smul.addr %s540, 8
          %s542 = scalar_lea.hbm %s2, %s541
          %s543 = sshll.u32 %s542, 4
          %s544 = int_to_ptr.hbm [resolvable:$true] %s543
          %s545 = sshll.u32 %s528, 4
          %s546 = int_to_ptr.vmem [resolvable:$true] %s545
          %551 = dma.hbm_to_vmem [thread:$0]  %s544, 12288, %s546, %s525, 384, 384, 24
        $region56: #{tpu_custom_call.1} parent=51 // pred_fallthru
          _
        // Predicated region
        $region57: #{tpu_custom_call.1} parent=51 // pred_check
          %p552 = pneg %p137
        $region58: #{tpu_custom_call.1} parent=51 // pred_check_branch
          %554 = sbr.rel (%p552) target = $region60
        $region59: #{tpu_custom_call.1} parent=51 // pred_region
          %s555 = sand.u32 %s47, 1
          %s556 = scalar_lea.sflag [#allocation10], %s555
          %s557 = sand.u32 %s127, 1
          %s558 = smul.addr %s557, 2
          %s559 = scalar_lea.vmem [#allocation9], %s558
          %s560 = sld [smem:[#allocation4 + %s54]]
          %s561 = sld [smem:[#allocation5 + %s54]]
          %s562 = ssub.s32 %s561, 1
          %p563 = scmp.gt.s32.totalorder %s562, 0
          %s564 = scalar_select %p563, %s562, 0
          %p565 = scmp.lt.s32.totalorder %s55, %s564
          %s566 = scalar_select %p565, %s55, %s564
          %s567 = sadd.s32 %s560, %s566
          %s568 = smul.u32 2, %s567
          %570 = vsyncadd %s556, 0
          %s571 = scalar_lea.hbm %s3, %s568
          %s573 = sshll.u32 %s571, 4
          %s574 = int_to_ptr.hbm [resolvable:$true] %s573
          %s575 = sshll.u32 %s559, 4
          %s576 = int_to_ptr.vmem [resolvable:$true] %s575
          %578 = dma.hbm_to_vmem [thread:$0]  %s574, 32, %s576, %s556
        $region60: #{tpu_custom_call.1} parent=51 // pred_fallthru
          _
        // Predicated region
        $region61: #{tpu_custom_call.1} parent=51 // pred_check
          %p579 = pneg %p163
        $region62: #{tpu_custom_call.1} parent=51 // pred_check_branch
          %581 = sbr.rel (%p579) target = $region64
        $region63: #{tpu_custom_call.1} parent=51 // pred_region
          %s582 = sand.u32 %s47, 1
          %s583 = scalar_lea.sflag [#allocation10], %s582
          %s584 = sand.u32 %s153, 1
          %s585 = smul.addr %s584, 128
          %s586 = scalar_lea.vmem [#allocation11], %s585
          %s587 = smul.u32 16, %s54
          %589 = vsyncadd %s583, 0
          %s590 = smul.addr %s587, 8
          %s591 = scalar_lea.hbm %s4, %s590
          %s592 = sshll.u32 %s591, 4
          %s593 = int_to_ptr.hbm [resolvable:$true] %s592
          %s594 = sshll.u32 %s586, 4
          %s595 = int_to_ptr.vmem [resolvable:$true] %s594
          %600 = dma.hbm_to_vmem [thread:$0]  %s593, 2048, %s595, %s583, 128, 128, 8
        $region64: #{tpu_custom_call.1} parent=51 // pred_fallthru
          _
      $region52: #{tpu_custom_call.1} parent=5 // pred_fallthru
        _
      %p601 = scmp.le.s32.totalorder 1, %s47
      %p602 = scmp.lt.s32.totalorder %s47, 13
      %p603 = pnand %p601, %p602
      %p604 = pneg %p603
      // Predicated region
      $region65: #{tpu_custom_call.1} parent=5 // pred_check
        _
      $region66: #{tpu_custom_call.1} parent=5 // pred_check_branch
        %606 = sbr.rel (%p603) target = $region68
      $region67: #{tpu_custom_call.1} parent=5 // pred_region
        %s607 = ssub.s32 %s47, 1
        %s608 = sand.u32 %s88, 1
        %s609 = scalar_lea.sflag [#allocation7], %s608
        %s610 = sand.u32 %s88, 1
        %s611 = smul.addr %s610, 768
        %s612 = scalar_lea.vmem [#allocation6], %s611
        // Predicated region
        $region69: #{tpu_custom_call.1} parent=67 // pred_check
          %p613 = pneg %p101
        $region70: #{tpu_custom_call.1} parent=67 // pred_check_branch
          %615 = sbr.rel (%p613) target = $region72
        $region71: #{tpu_custom_call.1} parent=67 // pred_region
          %617 = dma.done %s609, 12288
        $region72: #{tpu_custom_call.1} parent=67 // pred_fallthru
          _
        %s618 = sand.u32 %s52, 1
        %s619 = scalar_lea.sflag [#allocation10], %s618
        %s620 = sand.u32 %s130, 1
        %s621 = smul.addr %s620, 2
        %s622 = scalar_lea.vmem [#allocation9], %s621
        // Predicated region
        $region73: #{tpu_custom_call.1} parent=67 // pred_check
          %p623 = pneg %p143
        $region74: #{tpu_custom_call.1} parent=67 // pred_check_branch
          %625 = sbr.rel (%p623) target = $region76
        $region75: #{tpu_custom_call.1} parent=67 // pred_region
          %627 = dma.done %s619, 32
        $region76: #{tpu_custom_call.1} parent=67 // pred_fallthru
          _
        %s628 = sand.u32 %s52, 1
        %s629 = scalar_lea.sflag [#allocation10], %s628
        %s630 = sand.u32 %s156, 1
        %s631 = smul.addr %s630, 128
        %s632 = scalar_lea.vmem [#allocation11], %s631
        // Predicated region
        $region77: #{tpu_custom_call.1} parent=67 // pred_check
          %p633 = pneg %p169
        $region78: #{tpu_custom_call.1} parent=67 // pred_check_branch
          %635 = sbr.rel (%p633) target = $region80
        $region79: #{tpu_custom_call.1} parent=67 // pred_region
          %637 = dma.done %s629, 2048
        $region80: #{tpu_custom_call.1} parent=67 // pred_fallthru
          _
        // Predicated region
        $region81: #{tpu_custom_call.1} parent=67 // pred_check
          %p638 = pneg %p190
        $region82: #{tpu_custom_call.1} parent=67 // pred_check_branch
          %640 = sbr.rel (%p638) target = $region84
        $region83: #{tpu_custom_call.1} parent=67 // pred_region
          %642 = dma.done [#allocation13], 6144
        $region84: #{tpu_custom_call.1} parent=67 // pred_fallthru
          _
        // Predicated region
        $region85: #{tpu_custom_call.1} parent=67 // pred_check
          %p643 = pneg %p211
        $region86: #{tpu_custom_call.1} parent=67 // pred_check_branch
          %645 = sbr.rel (%p643) target = $region88
        $region87: #{tpu_custom_call.1} parent=67 // pred_region
          %647 = dma.done [#allocation13], 16
        $region88: #{tpu_custom_call.1} parent=67 // pred_fallthru
          _
        // Predicated region
        $region89: #{tpu_custom_call.1} parent=67 // pred_check
          %p648 = pneg %p232
        $region90: #{tpu_custom_call.1} parent=67 // pred_check_branch
          %650 = sbr.rel (%p648) target = $region92
        $region91: #{tpu_custom_call.1} parent=67 // pred_region
          %652 = dma.done [#allocation16], 2048
        $region92: #{tpu_custom_call.1} parent=67 // pred_fallthru
          _
        // Predicated region
        $region93: #{tpu_custom_call.1} parent=67 // pred_check
          %p653 = pneg %p253
        $region94: #{tpu_custom_call.1} parent=67 // pred_check_branch
          %655 = sbr.rel (%p653) target = $region96
        $region95: #{tpu_custom_call.1} parent=67 // pred_region
          %657 = dma.done [#allocation16], 16
        $region96: #{tpu_custom_call.1} parent=67 // pred_fallthru
          _
        // Predicated region
        $region97: #{tpu_custom_call.1} parent=67 // pred_check
          %p658 = pneg %p274
        $region98: #{tpu_custom_call.1} parent=67 // pred_check_branch
          %660 = sbr.rel (%p658) target = $region100
        $region99: #{tpu_custom_call.1} parent=67 // pred_region
          %662 = dma.done [#allocation19], 2048
        $region100: #{tpu_custom_call.1} parent=67 // pred_fallthru
          _
        // Predicated region
        $region101: #{tpu_custom_call.1} parent=67 // pred_check
          %p663 = pneg %p295
        $region102: #{tpu_custom_call.1} parent=67 // pred_check_branch
          %665 = sbr.rel (%p663) target = $region104
        $region103: #{tpu_custom_call.1} parent=67 // pred_region
          %667 = dma.done [#allocation19], 2048
        $region104: #{tpu_custom_call.1} parent=67 // pred_fallthru
          _
        // Predicated region
        $region105: #{tpu_custom_call.1} parent=67 // pred_check
          %p668 = pneg %p316
        $region106: #{tpu_custom_call.1} parent=67 // pred_check_branch
          %670 = sbr.rel (%p668) target = $region108
        $region107: #{tpu_custom_call.1} parent=67 // pred_region
          %672 = dma.done [#allocation22], 16
        $region108: #{tpu_custom_call.1} parent=67 // pred_fallthru
          _
        // Predicated region
        $region109: #{tpu_custom_call.1} parent=67 // pred_check
          %p673 = pneg %p337
        $region110: #{tpu_custom_call.1} parent=67 // pred_check_branch
          %675 = sbr.rel (%p673) target = $region112
        $region111: #{tpu_custom_call.1} parent=67 // pred_region
          %677 = dma.done [#allocation22], 2048
        $region112: #{tpu_custom_call.1} parent=67 // pred_fallthru
          _
        // Predicated region
        $region113: #{tpu_custom_call.1} parent=67 // pred_check
          %p678 = pneg %p358
        $region114: #{tpu_custom_call.1} parent=67 // pred_check_branch
          %680 = sbr.rel (%p678) target = $region116
        $region115: #{tpu_custom_call.1} parent=67 // pred_region
          %682 = dma.done [#allocation25], 16
        $region116: #{tpu_custom_call.1} parent=67 // pred_fallthru
          _
        %s683 = sand.u32 %s88, 1
        %s684 = scalar_lea.sflag [#allocation7], %s683
        %s685 = sand.u32 %s88, 1
        %s686 = smul.addr %s685, 768
        %s687 = scalar_lea.vmem [#allocation6], %s686
        %p688 = pneg %p101
        %p689 = pneg %p98
        %s690 = sand.u32 %s52, 1
        %s691 = scalar_lea.sflag [#allocation10], %s690
        %s692 = sand.u32 %s130, 1
        %s693 = smul.addr %s692, 2
        %s694 = scalar_lea.vmem [#allocation9], %s693
        %p695 = pneg %p143
        %p696 = pneg %p140
        %s697 = sand.u32 %s52, 1
        %s698 = scalar_lea.sflag [#allocation10], %s697
        %s699 = sand.u32 %s156, 1
        %s700 = smul.addr %s699, 128
        %s701 = scalar_lea.vmem [#allocation11], %s700
        %p702 = pneg %p169
        %p703 = pneg %p166
        %p704 = pneg %p190
        %p705 = pneg %p187
        %p706 = pneg %p211
        %p707 = pneg %p208
        %p708 = pneg %p232
        %p709 = pneg %p229
        %p710 = pneg %p253
        %p711 = pneg %p250
        %p712 = pneg %p274
        %p713 = pneg %p271
        %p714 = pneg %p295
        %p715 = pneg %p292
        %p716 = pneg %p316
        %p717 = pneg %p313
        %p718 = pneg %p337
        %p719 = pneg %p334
        %p720 = pneg %p358
        %p721 = pneg %p355
        %p722 = pneg %p384
        %p723 = pneg %p381
        %s724 = sand.u32 %s371, 1
        %s725 = scalar_lea.sflag [#allocation8], %s724
        %s726 = sand.u32 %s371, 1
        %s727 = smul.addr %s726, 128
        %s728 = scalar_lea.vmem [#allocation26], %s727
        %s729 = sld [smem:[#allocation4 + %s56]]
        %s730 = sld [smem:[#allocation5 + %s56]]
        %s731 = ssub.s32 %s730, 1
        %p732 = scmp.gt.s32.totalorder %s731, 0
        %s733 = scalar_select %p732, %s731, 0
        %p734 = scmp.lt.s32.totalorder %s57, %s733
        %s735 = scalar_select %p734, %s57, %s733
        %s736 = sadd.s32 %s729, %s735
        %s737 = smul.u32 32, %s736
        %s738 = sld [smem:[#allocation4 + %s56]]
        %s739 = sld [smem:[#allocation5 + %s56]]
        %s740 = ssub.s32 %s739, 1
        %p741 = scmp.gt.s32.totalorder %s740, 0
        %s742 = scalar_select %p741, %s740, 0
        %p743 = scmp.lt.s32.totalorder %s57, %s742
        %s744 = scalar_select %p743, %s57, %s742
        %s745 = sadd.s32 %s738, %s744
        %s746 = smul.u32 2, %s745
        %s747 = smul.u32 16, %s56
        %s748 = smul.u32 16, %s56
        %p749 = scmp.eq.s32.totalorder %s57, 0
        // Predicated region
        $region117: #{tpu_custom_call.1} parent=67 // pred_check
          %p750 = pneg %p749
        $region118: #{tpu_custom_call.1} parent=67 // pred_check_branch
          %752 = sbr.rel (%p750) target = $region120
        $region119: #{tpu_custom_call.1} parent=67 // pred_region
          %753 = vst [vmem:[#allocation2] sm:$0xff] 0.0
          %754 = vst [vmem:[#allocation2 + $0x8] sm:$0xff] 0.0
          %755 = vst [vmem:[#allocation2 + $0x10] sm:$0xff] 0.0
          %756 = vst [vmem:[#allocation2 + $0x18] sm:$0xff] 0.0
          %757 = vst [vmem:[#allocation2 + $0x20] sm:$0xff] 0.0
          %758 = vst [vmem:[#allocation2 + $0x28] sm:$0xff] 0.0
          %759 = vst [vmem:[#allocation2 + $0x30] sm:$0xff] 0.0
          %760 = vst [vmem:[#allocation2 + $0x38] sm:$0xff] 0.0
          %761 = vst [vmem:[#allocation2 + $0x40] sm:$0xff] 0.0
          %762 = vst [vmem:[#allocation2 + $0x48] sm:$0xff] 0.0
          %763 = vst [vmem:[#allocation2 + $0x50] sm:$0xff] 0.0
          %764 = vst [vmem:[#allocation2 + $0x58] sm:$0xff] 0.0
          %765 = vst [vmem:[#allocation2 + $0x60] sm:$0xff] 0.0
          %766 = vst [vmem:[#allocation2 + $0x68] sm:$0xff] 0.0
          %767 = vst [vmem:[#allocation2 + $0x70] sm:$0xff] 0.0
          %768 = vst [vmem:[#allocation2 + $0x78] sm:$0xff] 0.0
        $region120: #{tpu_custom_call.1} parent=67 // pred_fallthru
          _
        %s769 = sld [smem:[#allocation5 + %s56]]
        %p770 = scmp.lt.s32.totalorder %s57, %s769
        // Predicated region
        $region121: #{tpu_custom_call.1} parent=67 // pred_check
          %p771 = pneg %p770
        $region122: #{tpu_custom_call.1} parent=67 // pred_check_branch
          %773 = sbr.rel (%p771) target = $region124
        $region123: #{tpu_custom_call.1} parent=67 // pred_region
          %v774 = vld [vmem:[%s612] sm:$0xff]
          %v775 = vld [vmem:[%s612 + $0x8] sm:$0xff]
          %v776 = vld [vmem:[%s612 + $0x10] sm:$0xff]
          %v777 = vld [vmem:[%s612 + $0x18] sm:$0xff]
          %v778 = vld [vmem:[%s612 + $0x20] sm:$0xff]
          %v779 = vld [vmem:[%s612 + $0x28] sm:$0xff]
          %v780 = vld [vmem:[%s612 + $0x30] sm:$0xff]
          %v781 = vld [vmem:[%s612 + $0x38] sm:$0xff]
          %v782 = vld [vmem:[%s612 + $0x40] sm:$0xff]
          %v783 = vld [vmem:[%s612 + $0x48] sm:$0xff]
          %v784 = vld [vmem:[%s612 + $0x50] sm:$0xff]
          %v785 = vld [vmem:[%s612 + $0x58] sm:$0xff]
          %v786 = vld [vmem:[%s612 + $0x60] sm:$0xff]
          %v787 = vld [vmem:[%s612 + $0x68] sm:$0xff]
          %v788 = vld [vmem:[%s612 + $0x70] sm:$0xff]
          %v789 = vld [vmem:[%s612 + $0x78] sm:$0xff]
          %v790 = vld [vmem:[%s612 + $0x80] sm:$0xff]
          %v791 = vld [vmem:[%s612 + $0x88] sm:$0xff]
          %v792 = vld [vmem:[%s612 + $0x90] sm:$0xff]
          %v793 = vld [vmem:[%s612 + $0x98] sm:$0xff]
          %v794 = vld [vmem:[%s612 + $0xa0] sm:$0xff]
          %v795 = vld [vmem:[%s612 + $0xa8] sm:$0xff]
          %v796 = vld [vmem:[%s612 + $0xb0] sm:$0xff]
          %v797 = vld [vmem:[%s612 + $0xb8] sm:$0xff]
          %v798 = vld [vmem:[%s612 + $0xc0] sm:$0xff]
          %v799 = vld [vmem:[%s612 + $0xc8] sm:$0xff]
          %v800 = vld [vmem:[%s612 + $0xd0] sm:$0xff]
          %v801 = vld [vmem:[%s612 + $0xd8] sm:$0xff]
          %v802 = vld [vmem:[%s612 + $0xe0] sm:$0xff]
          %v803 = vld [vmem:[%s612 + $0xe8] sm:$0xff]
          %v804 = vld [vmem:[%s612 + $0xf0] sm:$0xff]
          %v805 = vld [vmem:[%s612 + $0xf8] sm:$0xff]
          %v806 = vld [vmem:[%s612 + $0x100] sm:$0xff]
          %v807 = vld [vmem:[%s612 + $0x108] sm:$0xff]
          %v808 = vld [vmem:[%s612 + $0x110] sm:$0xff]
          %v809 = vld [vmem:[%s612 + $0x118] sm:$0xff]
          %v810 = vld [vmem:[%s612 + $0x120] sm:$0xff]
          %v811 = vld [vmem:[%s612 + $0x128] sm:$0xff]
          %v812 = vld [vmem:[%s612 + $0x130] sm:$0xff]
          %v813 = vld [vmem:[%s612 + $0x138] sm:$0xff]
          %v814 = vld [vmem:[%s612 + $0x140] sm:$0xff]
          %v815 = vld [vmem:[%s612 + $0x148] sm:$0xff]
          %v816 = vld [vmem:[%s612 + $0x150] sm:$0xff]
          %v817 = vld [vmem:[%s612 + $0x158] sm:$0xff]
          %v818 = vld [vmem:[%s612 + $0x160] sm:$0xff]
          %v819 = vld [vmem:[%s612 + $0x168] sm:$0xff]
          %v820 = vld [vmem:[%s612 + $0x170] sm:$0xff]
          %v821 = vld [vmem:[%s612 + $0x178] sm:$0xff]
          %v822 = vld [vmem:[%s612 + $0x180] sm:$0xff]
          %v823 = vld [vmem:[%s612 + $0x188] sm:$0xff]
          %v824 = vld [vmem:[%s612 + $0x190] sm:$0xff]
          %v825 = vld [vmem:[%s612 + $0x198] sm:$0xff]
          %v826 = vld [vmem:[%s612 + $0x1a0] sm:$0xff]
          %v827 = vld [vmem:[%s612 + $0x1a8] sm:$0xff]
          %v828 = vld [vmem:[%s612 + $0x1b0] sm:$0xff]
          %v829 = vld [vmem:[%s612 + $0x1b8] sm:$0xff]
          %v830 = vld [vmem:[%s612 + $0x1c0] sm:$0xff]
          %v831 = vld [vmem:[%s612 + $0x1c8] sm:$0xff]
          %v832 = vld [vmem:[%s612 + $0x1d0] sm:$0xff]
          %v833 = vld [vmem:[%s612 + $0x1d8] sm:$0xff]
          %v834 = vld [vmem:[%s612 + $0x1e0] sm:$0xff]
          %v835 = vld [vmem:[%s612 + $0x1e8] sm:$0xff]
          %v836 = vld [vmem:[%s612 + $0x1f0] sm:$0xff]
          %v837 = vld [vmem:[%s612 + $0x1f8] sm:$0xff]
          %v838 = vld [vmem:[%s612 + $0x200] sm:$0xff]
          %v839 = vld [vmem:[%s612 + $0x208] sm:$0xff]
          %v840 = vld [vmem:[%s612 + $0x210] sm:$0xff]
          %v841 = vld [vmem:[%s612 + $0x218] sm:$0xff]
          %v842 = vld [vmem:[%s612 + $0x220] sm:$0xff]
          %v843 = vld [vmem:[%s612 + $0x228] sm:$0xff]
          %v844 = vld [vmem:[%s612 + $0x230] sm:$0xff]
          %v845 = vld [vmem:[%s612 + $0x238] sm:$0xff]
          %v846 = vld [vmem:[%s612 + $0x240] sm:$0xff]
          %v847 = vld [vmem:[%s612 + $0x248] sm:$0xff]
          %v848 = vld [vmem:[%s612 + $0x250] sm:$0xff]
          %v849 = vld [vmem:[%s612 + $0x258] sm:$0xff]
          %v850 = vld [vmem:[%s612 + $0x260] sm:$0xff]
          %v851 = vld [vmem:[%s612 + $0x268] sm:$0xff]
          %v852 = vld [vmem:[%s612 + $0x270] sm:$0xff]
          %v853 = vld [vmem:[%s612 + $0x278] sm:$0xff]
          %v854 = vld [vmem:[%s612 + $0x280] sm:$0xff]
          %v855 = vld [vmem:[%s612 + $0x288] sm:$0xff]
          %v856 = vld [vmem:[%s612 + $0x290] sm:$0xff]
          %v857 = vld [vmem:[%s612 + $0x298] sm:$0xff]
          %v858 = vld [vmem:[%s612 + $0x2a0] sm:$0xff]
          %v859 = vld [vmem:[%s612 + $0x2a8] sm:$0xff]
          %v860 = vld [vmem:[%s612 + $0x2b0] sm:$0xff]
          %v861 = vld [vmem:[%s612 + $0x2b8] sm:$0xff]
          %v862 = vld [vmem:[%s612 + $0x2c0] sm:$0xff]
          %v863 = vld [vmem:[%s612 + $0x2c8] sm:$0xff]
          %v864 = vld [vmem:[%s612 + $0x2d0] sm:$0xff]
          %v865 = vld [vmem:[%s612 + $0x2d8] sm:$0xff]
          %v866 = vld [vmem:[%s612 + $0x2e0] sm:$0xff]
          %v867 = vld [vmem:[%s612 + $0x2e8] sm:$0xff]
          %v868 = vld [vmem:[%s612 + $0x2f0] sm:$0xff]
          %v869 = vld [vmem:[%s612 + $0x2f8] sm:$0xff]
          %v870 = vld [vmem:[#allocation12] sm:$0xff]
          %v871 = vld [vmem:[#allocation12 + $0x8] sm:$0xff]
          %v872 = vld [vmem:[#allocation12 + $0x10] sm:$0xff]
          %v873 = vld [vmem:[#allocation12 + $0x18] sm:$0xff]
          %v874 = vld [vmem:[#allocation12 + $0x20] sm:$0xff]
          %v875 = vld [vmem:[#allocation12 + $0x28] sm:$0xff]
          %v876 = vld [vmem:[#allocation12 + $0x30] sm:$0xff]
          %v877 = vld [vmem:[#allocation12 + $0x38] sm:$0xff]
          %v878 = vld [vmem:[#allocation12 + $0x40] sm:$0xff]
          %v879 = vld [vmem:[#allocation12 + $0x48] sm:$0xff]
          %v880 = vld [vmem:[#allocation12 + $0x50] sm:$0xff]
          %v881 = vld [vmem:[#allocation12 + $0x58] sm:$0xff]
          %v882 = vld [vmem:[#allocation12 + $0x60] sm:$0xff]
          %v883 = vld [vmem:[#allocation12 + $0x68] sm:$0xff]
          %v884 = vld [vmem:[#allocation12 + $0x70] sm:$0xff]
          %v885 = vld [vmem:[#allocation12 + $0x78] sm:$0xff]
          %v886 = vld [vmem:[#allocation12 + $0x80] sm:$0xff]
          %v887 = vld [vmem:[#allocation12 + $0x88] sm:$0xff]
          %v888 = vld [vmem:[#allocation12 + $0x90] sm:$0xff]
          %v889 = vld [vmem:[#allocation12 + $0x98] sm:$0xff]
          %v890 = vld [vmem:[#allocation12 + $0xa0] sm:$0xff]
          %v891 = vld [vmem:[#allocation12 + $0xa8] sm:$0xff]
          %v892 = vld [vmem:[#allocation12 + $0xb0] sm:$0xff]
          %v893 = vld [vmem:[#allocation12 + $0xb8] sm:$0xff]
          %v894 = vld [vmem:[#allocation12 + $0xc0] sm:$0xff]
          %v895 = vld [vmem:[#allocation12 + $0xc8] sm:$0xff]
          %v896 = vld [vmem:[#allocation12 + $0xd0] sm:$0xff]
          %v897 = vld [vmem:[#allocation12 + $0xd8] sm:$0xff]
          %v898 = vld [vmem:[#allocation12 + $0xe0] sm:$0xff]
          %v899 = vld [vmem:[#allocation12 + $0xe8] sm:$0xff]
          %v900 = vld [vmem:[#allocation12 + $0xf0] sm:$0xff]
          %v901 = vld [vmem:[#allocation12 + $0xf8] sm:$0xff]
          %v902 = vld [vmem:[#allocation12 + $0x100] sm:$0xff]
          %v903 = vld [vmem:[#allocation12 + $0x108] sm:$0xff]
          %v904 = vld [vmem:[#allocation12 + $0x110] sm:$0xff]
          %v905 = vld [vmem:[#allocation12 + $0x118] sm:$0xff]
          %v906 = vld [vmem:[#allocation12 + $0x120] sm:$0xff]
          %v907 = vld [vmem:[#allocation12 + $0x128] sm:$0xff]
          %v908 = vld [vmem:[#allocation12 + $0x130] sm:$0xff]
          %v909 = vld [vmem:[#allocation12 + $0x138] sm:$0xff]
          %v910 = vld [vmem:[#allocation12 + $0x140] sm:$0xff]
          %v911 = vld [vmem:[#allocation12 + $0x148] sm:$0xff]
          %v912 = vld [vmem:[#allocation12 + $0x150] sm:$0xff]
          %v913 = vld [vmem:[#allocation12 + $0x158] sm:$0xff]
          %v914 = vld [vmem:[#allocation12 + $0x160] sm:$0xff]
          %v915 = vld [vmem:[#allocation12 + $0x168] sm:$0xff]
          %v916 = vld [vmem:[#allocation12 + $0x170] sm:$0xff]
          %v917 = vld [vmem:[#allocation12 + $0x178] sm:$0xff]
          %v918 = vld [vmem:[#allocation14] sm:$0x1]
          %v920 = vperm.slane %v918, 0
          %922 = vmatpush.msra.mxu0 %v885
          %923 = vmatpush.msra.mxu0 %v884
          %924 = vmatpush.msra.mxu0 %v883
          %925 = vmatpush.msra.mxu0 %v882
          %926 = vmatpush.msra.mxu0 %v881
          %927 = vmatpush.msra.mxu0 %v880
          %928 = vmatpush.msra.mxu0 %v879
          %929 = vmatpush.msra.mxu0 %v878
          %930 = vmatpush.msra.mxu0 %v877
          %931 = vmatpush.msra.mxu0 %v876
          %932 = vmatpush.msra.mxu0 %v875
          %933 = vmatpush.msra.mxu0 %v874
          %934 = vmatpush.msra.mxu0 %v873
          %935 = vmatpush.msra.mxu0 %v872
          %936 = vmatpush.msra.mxu0 %v871
          %937 = vmatpush.msra.mxu0 %v870
          %938 = vmatmul.f32.gmra.mxu0 %v774
          %v939 = vpop.f32.mrf.mxu0
          %v940 = vadd.f32 %v920, %v939
          %941 = vmatmul.f32.gmra.mxu0 %v777
          %v942 = vpop.f32.mrf.mxu0
          %v943 = vadd.f32 %v920, %v942
          %944 = vmatmul.f32.gmra.mxu0 %v780
          %v945 = vpop.f32.mrf.mxu0
          %v946 = vadd.f32 %v920, %v945
          %947 = vmatmul.f32.gmra.mxu0 %v783
          %v948 = vpop.f32.mrf.mxu0
          %v949 = vadd.f32 %v920, %v948
          %950 = vmatmul.f32.gmra.mxu0 %v786
          %v951 = vpop.f32.mrf.mxu0
          %v952 = vadd.f32 %v920, %v951
          %953 = vmatmul.f32.gmra.mxu0 %v789
          %v954 = vpop.f32.mrf.mxu0
          %v955 = vadd.f32 %v920, %v954
          %956 = vmatmul.f32.gmra.mxu0 %v792
          %v957 = vpop.f32.mrf.mxu0
          %v958 = vadd.f32 %v920, %v957
          %959 = vmatmul.f32.gmra.mxu0 %v795
          %v960 = vpop.f32.mrf.mxu0
          %v961 = vadd.f32 %v920, %v960
          %962 = vmatmul.f32.gmra.mxu0 %v798
          %v963 = vpop.f32.mrf.mxu0
          %v964 = vadd.f32 %v920, %v963
          %965 = vmatmul.f32.gmra.mxu0 %v801
          %v966 = vpop.f32.mrf.mxu0
          %v967 = vadd.f32 %v920, %v966
          %968 = vmatmul.f32.gmra.mxu0 %v804
          %v969 = vpop.f32.mrf.mxu0
          %v970 = vadd.f32 %v920, %v969
          %971 = vmatmul.f32.gmra.mxu0 %v807
          %v972 = vpop.f32.mrf.mxu0
          %v973 = vadd.f32 %v920, %v972
          %974 = vmatmul.f32.gmra.mxu0 %v810
          %v975 = vpop.f32.mrf.mxu0
          %v976 = vadd.f32 %v920, %v975
          %977 = vmatmul.f32.gmra.mxu0 %v813
          %v978 = vpop.f32.mrf.mxu0
          %v979 = vadd.f32 %v920, %v978
          %980 = vmatmul.f32.gmra.mxu0 %v816
          %v981 = vpop.f32.mrf.mxu0
          %v982 = vadd.f32 %v920, %v981
          %983 = vmatmul.f32.gmra.mxu0 %v819
          %v984 = vpop.f32.mrf.mxu0
          %v985 = vadd.f32 %v920, %v984
          %986 = vmatmul.f32.gmra.mxu0 %v822
          %v987 = vpop.f32.mrf.mxu0
          %v988 = vadd.f32 %v920, %v987
          %989 = vmatmul.f32.gmra.mxu0 %v825
          %v990 = vpop.f32.mrf.mxu0
          %v991 = vadd.f32 %v920, %v990
          %992 = vmatmul.f32.gmra.mxu0 %v828
          %v993 = vpop.f32.mrf.mxu0
          %v994 = vadd.f32 %v920, %v993
          %995 = vmatmul.f32.gmra.mxu0 %v831
          %v996 = vpop.f32.mrf.mxu0
          %v997 = vadd.f32 %v920, %v996
          %998 = vmatmul.f32.gmra.mxu0 %v834
          %v999 = vpop.f32.mrf.mxu0
          %v1000 = vadd.f32 %v920, %v999
          %1001 = vmatmul.f32.gmra.mxu0 %v837
          %v1002 = vpop.f32.mrf.mxu0
          %v1003 = vadd.f32 %v920, %v1002
          %1004 = vmatmul.f32.gmra.mxu0 %v840
          %v1005 = vpop.f32.mrf.mxu0
          %v1006 = vadd.f32 %v920, %v1005
          %1007 = vmatmul.f32.gmra.mxu0 %v843
          %v1008 = vpop.f32.mrf.mxu0
          %v1009 = vadd.f32 %v920, %v1008
          %1010 = vmatmul.f32.gmra.mxu0 %v846
          %v1011 = vpop.f32.mrf.mxu0
          %v1012 = vadd.f32 %v920, %v1011
          %1013 = vmatmul.f32.gmra.mxu0 %v849
          %v1014 = vpop.f32.mrf.mxu0
          %v1015 = vadd.f32 %v920, %v1014
          %1016 = vmatmul.f32.gmra.mxu0 %v852
          %v1017 = vpop.f32.mrf.mxu0
          %v1018 = vadd.f32 %v920, %v1017
          %1019 = vmatmul.f32.gmra.mxu0 %v855
          %v1020 = vpop.f32.mrf.mxu0
          %v1021 = vadd.f32 %v920, %v1020
          %1022 = vmatmul.f32.gmra.mxu0 %v858
          %v1023 = vpop.f32.mrf.mxu0
          %v1024 = vadd.f32 %v920, %v1023
          %1025 = vmatmul.f32.gmra.mxu0 %v861
          %v1026 = vpop.f32.mrf.mxu0
          %v1027 = vadd.f32 %v920, %v1026
          %1028 = vmatmul.f32.gmra.mxu0 %v864
          %v1029 = vpop.f32.mrf.mxu0
          %v1030 = vadd.f32 %v920, %v1029
          %1031 = vmatmul.f32.gmra.mxu0 %v867
          %v1032 = vpop.f32.mrf.mxu0
          %v1033 = vadd.f32 %v920, %v1032
          %1034 = vdwg.mxu0
          %1035 = vmatpush.msra.mxu0 %v901
          %1036 = vmatpush.msra.mxu0 %v900
          %1037 = vmatpush.msra.mxu0 %v899
          %1038 = vmatpush.msra.mxu0 %v898
          %1039 = vmatpush.msra.mxu0 %v897
          %1040 = vmatpush.msra.mxu0 %v896
          %1041 = vmatpush.msra.mxu0 %v895
          %1042 = vmatpush.msra.mxu0 %v894
          %1043 = vmatpush.msra.mxu0 %v893
          %1044 = vmatpush.msra.mxu0 %v892
          %1045 = vmatpush.msra.mxu0 %v891
          %1046 = vmatpush.msra.mxu0 %v890
          %1047 = vmatpush.msra.mxu0 %v889
          %1048 = vmatpush.msra.mxu0 %v888
          %1049 = vmatpush.msra.mxu0 %v887
          %1050 = vmatpush.msra.mxu0 %v886
          %1051 = vmatmul.f32.gmra.mxu0 %v775
          %v1052 = vpop.f32.mrf.mxu0
          %v1053 = vadd.f32 %v940, %v1052
          %1054 = vmatmul.f32.gmra.mxu0 %v778
          %v1055 = vpop.f32.mrf.mxu0
          %v1056 = vadd.f32 %v943, %v1055
          %1057 = vmatmul.f32.gmra.mxu0 %v781
          %v1058 = vpop.f32.mrf.mxu0
          %v1059 = vadd.f32 %v946, %v1058
          %1060 = vmatmul.f32.gmra.mxu0 %v784
          %v1061 = vpop.f32.mrf.mxu0
          %v1062 = vadd.f32 %v949, %v1061
          %1063 = vmatmul.f32.gmra.mxu0 %v787
          %v1064 = vpop.f32.mrf.mxu0
          %v1065 = vadd.f32 %v952, %v1064
          %1066 = vmatmul.f32.gmra.mxu0 %v790
          %v1067 = vpop.f32.mrf.mxu0
          %v1068 = vadd.f32 %v955, %v1067
          %1069 = vmatmul.f32.gmra.mxu0 %v793
          %v1070 = vpop.f32.mrf.mxu0
          %v1071 = vadd.f32 %v958, %v1070
          %1072 = vmatmul.f32.gmra.mxu0 %v796
          %v1073 = vpop.f32.mrf.mxu0
          %v1074 = vadd.f32 %v961, %v1073
          %1075 = vmatmul.f32.gmra.mxu0 %v799
          %v1076 = vpop.f32.mrf.mxu0
          %v1077 = vadd.f32 %v964, %v1076
          %1078 = vmatmul.f32.gmra.mxu0 %v802
          %v1079 = vpop.f32.mrf.mxu0
          %v1080 = vadd.f32 %v967, %v1079
          %1081 = vmatmul.f32.gmra.mxu0 %v805
          %v1082 = vpop.f32.mrf.mxu0
          %v1083 = vadd.f32 %v970, %v1082
          %1084 = vmatmul.f32.gmra.mxu0 %v808
          %v1085 = vpop.f32.mrf.mxu0
          %v1086 = vadd.f32 %v973, %v1085
          %1087 = vmatmul.f32.gmra.mxu0 %v811
          %v1088 = vpop.f32.mrf.mxu0
          %v1089 = vadd.f32 %v976, %v1088
          %1090 = vmatmul.f32.gmra.mxu0 %v814
          %v1091 = vpop.f32.mrf.mxu0
          %v1092 = vadd.f32 %v979, %v1091
          %1093 = vmatmul.f32.gmra.mxu0 %v817
          %v1094 = vpop.f32.mrf.mxu0
          %v1095 = vadd.f32 %v982, %v1094
          %1096 = vmatmul.f32.gmra.mxu0 %v820
          %v1097 = vpop.f32.mrf.mxu0
          %v1098 = vadd.f32 %v985, %v1097
          %1099 = vmatmul.f32.gmra.mxu0 %v823
          %v1100 = vpop.f32.mrf.mxu0
          %v1101 = vadd.f32 %v988, %v1100
          %1102 = vmatmul.f32.gmra.mxu0 %v826
          %v1103 = vpop.f32.mrf.mxu0
          %v1104 = vadd.f32 %v991, %v1103
          %1105 = vmatmul.f32.gmra.mxu0 %v829
          %v1106 = vpop.f32.mrf.mxu0
          %v1107 = vadd.f32 %v994, %v1106
          %1108 = vmatmul.f32.gmra.mxu0 %v832
          %v1109 = vpop.f32.mrf.mxu0
          %v1110 = vadd.f32 %v997, %v1109
          %1111 = vmatmul.f32.gmra.mxu0 %v835
          %v1112 = vpop.f32.mrf.mxu0
          %v1113 = vadd.f32 %v1000, %v1112
          %1114 = vmatmul.f32.gmra.mxu0 %v838
          %v1115 = vpop.f32.mrf.mxu0
          %v1116 = vadd.f32 %v1003, %v1115
          %1117 = vmatmul.f32.gmra.mxu0 %v841
          %v1118 = vpop.f32.mrf.mxu0
          %v1119 = vadd.f32 %v1006, %v1118
          %1120 = vmatmul.f32.gmra.mxu0 %v844
          %v1121 = vpop.f32.mrf.mxu0
          %v1122 = vadd.f32 %v1009, %v1121
          %1123 = vmatmul.f32.gmra.mxu0 %v847
          %v1124 = vpop.f32.mrf.mxu0
          %v1125 = vadd.f32 %v1012, %v1124
          %1126 = vmatmul.f32.gmra.mxu0 %v850
          %v1127 = vpop.f32.mrf.mxu0
          %v1128 = vadd.f32 %v1015, %v1127
          %1129 = vmatmul.f32.gmra.mxu0 %v853
          %v1130 = vpop.f32.mrf.mxu0
          %v1131 = vadd.f32 %v1018, %v1130
          %1132 = vmatmul.f32.gmra.mxu0 %v856
          %v1133 = vpop.f32.mrf.mxu0
          %v1134 = vadd.f32 %v1021, %v1133
          %1135 = vmatmul.f32.gmra.mxu0 %v859
          %v1136 = vpop.f32.mrf.mxu0
          %v1137 = vadd.f32 %v1024, %v1136
          %1138 = vmatmul.f32.gmra.mxu0 %v862
          %v1139 = vpop.f32.mrf.mxu0
          %v1140 = vadd.f32 %v1027, %v1139
          %1141 = vmatmul.f32.gmra.mxu0 %v865
          %v1142 = vpop.f32.mrf.mxu0
          %v1143 = vadd.f32 %v1030, %v1142
          %1144 = vmatmul.f32.gmra.mxu0 %v868
          %v1145 = vpop.f32.mrf.mxu0
          %v1146 = vadd.f32 %v1033, %v1145
          %1147 = vdwg.mxu0
          %1148 = vmatpush.msra.mxu0 %v917
          %1149 = vmatpush.msra.mxu0 %v916
          %1150 = vmatpush.msra.mxu0 %v915
          %1151 = vmatpush.msra.mxu0 %v914
          %1152 = vmatpush.msra.mxu0 %v913
          %1153 = vmatpush.msra.mxu0 %v912
          %1154 = vmatpush.msra.mxu0 %v911
          %1155 = vmatpush.msra.mxu0 %v910
          %1156 = vmatpush.msra.mxu0 %v909
          %1157 = vmatpush.msra.mxu0 %v908
          %1158 = vmatpush.msra.mxu0 %v907
          %1159 = vmatpush.msra.mxu0 %v906
          %1160 = vmatpush.msra.mxu0 %v905
          %1161 = vmatpush.msra.mxu0 %v904
          %1162 = vmatpush.msra.mxu0 %v903
          %1163 = vmatpush.msra.mxu0 %v902
          %1164 = vmatmul.f32.gmra.mxu0 %v776
          %v1165 = vpop.f32.mrf.mxu0
          %v1166 = vadd.f32 %v1053, %v1165
          %1167 = vmatmul.f32.gmra.mxu0 %v779
          %v1168 = vpop.f32.mrf.mxu0
          %v1169 = vadd.f32 %v1056, %v1168
          %1170 = vmatmul.f32.gmra.mxu0 %v782
          %v1171 = vpop.f32.mrf.mxu0
          %v1172 = vadd.f32 %v1059, %v1171
          %1173 = vmatmul.f32.gmra.mxu0 %v785
          %v1174 = vpop.f32.mrf.mxu0
          %v1175 = vadd.f32 %v1062, %v1174
          %1176 = vmatmul.f32.gmra.mxu0 %v788
          %v1177 = vpop.f32.mrf.mxu0
          %v1178 = vadd.f32 %v1065, %v1177
          %1179 = vmatmul.f32.gmra.mxu0 %v791
          %v1180 = vpop.f32.mrf.mxu0
          %v1181 = vadd.f32 %v1068, %v1180
          %1182 = vmatmul.f32.gmra.mxu0 %v794
          %v1183 = vpop.f32.mrf.mxu0
          %v1184 = vadd.f32 %v1071, %v1183
          %1185 = vmatmul.f32.gmra.mxu0 %v797
          %v1186 = vpop.f32.mrf.mxu0
          %v1187 = vadd.f32 %v1074, %v1186
          %1188 = vmatmul.f32.gmra.mxu0 %v800
          %v1189 = vpop.f32.mrf.mxu0
          %v1190 = vadd.f32 %v1077, %v1189
          %1191 = vmatmul.f32.gmra.mxu0 %v803
          %v1192 = vpop.f32.mrf.mxu0
          %v1193 = vadd.f32 %v1080, %v1192
          %1194 = vmatmul.f32.gmra.mxu0 %v806
          %v1195 = vpop.f32.mrf.mxu0
          %v1196 = vadd.f32 %v1083, %v1195
          %1197 = vmatmul.f32.gmra.mxu0 %v809
          %v1198 = vpop.f32.mrf.mxu0
          %v1199 = vadd.f32 %v1086, %v1198
          %1200 = vmatmul.f32.gmra.mxu0 %v812
          %v1201 = vpop.f32.mrf.mxu0
          %v1202 = vadd.f32 %v1089, %v1201
          %1203 = vmatmul.f32.gmra.mxu0 %v815
          %v1204 = vpop.f32.mrf.mxu0
          %v1205 = vadd.f32 %v1092, %v1204
          %1206 = vmatmul.f32.gmra.mxu0 %v818
          %v1207 = vpop.f32.mrf.mxu0
          %v1208 = vadd.f32 %v1095, %v1207
          %1209 = vmatmul.f32.gmra.mxu0 %v821
          %v1210 = vpop.f32.mrf.mxu0
          %v1211 = vadd.f32 %v1098, %v1210
          %1212 = vmatmul.f32.gmra.mxu0 %v824
          %v1213 = vpop.f32.mrf.mxu0
          %v1214 = vadd.f32 %v1101, %v1213
          %1215 = vmatmul.f32.gmra.mxu0 %v827
          %v1216 = vpop.f32.mrf.mxu0
          %v1217 = vadd.f32 %v1104, %v1216
          %1218 = vmatmul.f32.gmra.mxu0 %v830
          %v1219 = vpop.f32.mrf.mxu0
          %v1220 = vadd.f32 %v1107, %v1219
          %1221 = vmatmul.f32.gmra.mxu0 %v833
          %v1222 = vpop.f32.mrf.mxu0
          %v1223 = vadd.f32 %v1110, %v1222
          %1224 = vmatmul.f32.gmra.mxu0 %v836
          %v1225 = vpop.f32.mrf.mxu0
          %v1226 = vadd.f32 %v1113, %v1225
          %1227 = vmatmul.f32.gmra.mxu0 %v839
          %v1228 = vpop.f32.mrf.mxu0
          %v1229 = vadd.f32 %v1116, %v1228
          %1230 = vmatmul.f32.gmra.mxu0 %v842
          %v1231 = vpop.f32.mrf.mxu0
          %v1232 = vadd.f32 %v1119, %v1231
          %1233 = vmatmul.f32.gmra.mxu0 %v845
          %v1234 = vpop.f32.mrf.mxu0
          %v1235 = vadd.f32 %v1122, %v1234
          %1236 = vmatmul.f32.gmra.mxu0 %v848
          %v1237 = vpop.f32.mrf.mxu0
          %v1238 = vadd.f32 %v1125, %v1237
          %1239 = vmatmul.f32.gmra.mxu0 %v851
          %v1240 = vpop.f32.mrf.mxu0
          %v1241 = vadd.f32 %v1128, %v1240
          %1242 = vmatmul.f32.gmra.mxu0 %v854
          %v1243 = vpop.f32.mrf.mxu0
          %v1244 = vadd.f32 %v1131, %v1243
          %1245 = vmatmul.f32.gmra.mxu0 %v857
          %v1246 = vpop.f32.mrf.mxu0
          %v1247 = vadd.f32 %v1134, %v1246
          %1248 = vmatmul.f32.gmra.mxu0 %v860
          %v1249 = vpop.f32.mrf.mxu0
          %v1250 = vadd.f32 %v1137, %v1249
          %1251 = vmatmul.f32.gmra.mxu0 %v863
          %v1252 = vpop.f32.mrf.mxu0
          %v1253 = vadd.f32 %v1140, %v1252
          %1254 = vmatmul.f32.gmra.mxu0 %v866
          %v1255 = vpop.f32.mrf.mxu0
          %v1256 = vadd.f32 %v1143, %v1255
          %1257 = vmatmul.f32.gmra.mxu0 %v869
          %v1258 = vpop.f32.mrf.mxu0
          %v1259 = vadd.f32 %v1146, %v1258
          %1260 = vdwg.mxu0
          %v1261 = vmax.f32 %v1166, 0.0
          %v1262 = vmax.f32 %v1169, 0.0
          %v1263 = vmax.f32 %v1172, 0.0
          %v1264 = vmax.f32 %v1175, 0.0
          %v1265 = vmax.f32 %v1178, 0.0
          %v1266 = vmax.f32 %v1181, 0.0
          %v1267 = vmax.f32 %v1184, 0.0
          %v1268 = vmax.f32 %v1187, 0.0
          %v1269 = vmax.f32 %v1190, 0.0
          %v1270 = vmax.f32 %v1193, 0.0
          %v1271 = vmax.f32 %v1196, 0.0
          %v1272 = vmax.f32 %v1199, 0.0
          %v1273 = vmax.f32 %v1202, 0.0
          %v1274 = vmax.f32 %v1205, 0.0
          %v1275 = vmax.f32 %v1208, 0.0
          %v1276 = vmax.f32 %v1211, 0.0
          %v1277 = vmax.f32 %v1214, 0.0
          %v1278 = vmax.f32 %v1217, 0.0
          %v1279 = vmax.f32 %v1220, 0.0
          %v1280 = vmax.f32 %v1223, 0.0
          %v1281 = vmax.f32 %v1226, 0.0
          %v1282 = vmax.f32 %v1229, 0.0
          %v1283 = vmax.f32 %v1232, 0.0
          %v1284 = vmax.f32 %v1235, 0.0
          %v1285 = vmax.f32 %v1238, 0.0
          %v1286 = vmax.f32 %v1241, 0.0
          %v1287 = vmax.f32 %v1244, 0.0
          %v1288 = vmax.f32 %v1247, 0.0
          %v1289 = vmax.f32 %v1250, 0.0
          %v1290 = vmax.f32 %v1253, 0.0
          %v1291 = vmax.f32 %v1256, 0.0
          %v1292 = vmax.f32 %v1259, 0.0
          %v1293 = vld [vmem:[#allocation15] sm:$0xff]
          %v1294 = vld [vmem:[#allocation15 + $0x8] sm:$0xff]
          %v1295 = vld [vmem:[#allocation15 + $0x10] sm:$0xff]
          %v1296 = vld [vmem:[#allocation15 + $0x18] sm:$0xff]
          %v1297 = vld [vmem:[#allocation15 + $0x20] sm:$0xff]
          %v1298 = vld [vmem:[#allocation15 + $0x28] sm:$0xff]
          %v1299 = vld [vmem:[#allocation15 + $0x30] sm:$0xff]
          %v1300 = vld [vmem:[#allocation15 + $0x38] sm:$0xff]
          %v1301 = vld [vmem:[#allocation15 + $0x40] sm:$0xff]
          %v1302 = vld [vmem:[#allocation15 + $0x48] sm:$0xff]
          %v1303 = vld [vmem:[#allocation15 + $0x50] sm:$0xff]
          %v1304 = vld [vmem:[#allocation15 + $0x58] sm:$0xff]
          %v1305 = vld [vmem:[#allocation15 + $0x60] sm:$0xff]
          %v1306 = vld [vmem:[#allocation15 + $0x68] sm:$0xff]
          %v1307 = vld [vmem:[#allocation15 + $0x70] sm:$0xff]
          %v1308 = vld [vmem:[#allocation15 + $0x78] sm:$0xff]
          %v1309 = vld [vmem:[#allocation17] sm:$0x1]
          %v1311 = vperm.slane %v1309, 0
          %1313 = vmatpush.msra.mxu0 %v1308
          %1314 = vmatpush.msra.mxu0 %v1307
          %1315 = vmatpush.msra.mxu0 %v1306
          %1316 = vmatpush.msra.mxu0 %v1305
          %1317 = vmatpush.msra.mxu0 %v1304
          %1318 = vmatpush.msra.mxu0 %v1303
          %1319 = vmatpush.msra.mxu0 %v1302
          %1320 = vmatpush.msra.mxu0 %v1301
          %1321 = vmatpush.msra.mxu0 %v1300
          %1322 = vmatpush.msra.mxu0 %v1299
          %1323 = vmatpush.msra.mxu0 %v1298
          %1324 = vmatpush.msra.mxu0 %v1297
          %1325 = vmatpush.msra.mxu0 %v1296
          %1326 = vmatpush.msra.mxu0 %v1295
          %1327 = vmatpush.msra.mxu0 %v1294
          %1328 = vmatpush.msra.mxu0 %v1293
          %1329 = vmatmul.f32.gmra.mxu0 %v1261
          %v1330 = vpop.f32.mrf.mxu0
          %v1331 = vadd.f32 %v1311, %v1330
          %1332 = vmatmul.f32.gmra.mxu0 %v1262
          %v1333 = vpop.f32.mrf.mxu0
          %v1334 = vadd.f32 %v1311, %v1333
          %1335 = vmatmul.f32.gmra.mxu0 %v1263
          %v1336 = vpop.f32.mrf.mxu0
          %v1337 = vadd.f32 %v1311, %v1336
          %1338 = vmatmul.f32.gmra.mxu0 %v1264
          %v1339 = vpop.f32.mrf.mxu0
          %v1340 = vadd.f32 %v1311, %v1339
          %1341 = vmatmul.f32.gmra.mxu0 %v1265
          %v1342 = vpop.f32.mrf.mxu0
          %v1343 = vadd.f32 %v1311, %v1342
          %1344 = vmatmul.f32.gmra.mxu0 %v1266
          %v1345 = vpop.f32.mrf.mxu0
          %v1346 = vadd.f32 %v1311, %v1345
          %1347 = vmatmul.f32.gmra.mxu0 %v1267
          %v1348 = vpop.f32.mrf.mxu0
          %v1349 = vadd.f32 %v1311, %v1348
          %1350 = vmatmul.f32.gmra.mxu0 %v1268
          %v1351 = vpop.f32.mrf.mxu0
          %v1352 = vadd.f32 %v1311, %v1351
          %1353 = vmatmul.f32.gmra.mxu0 %v1269
          %v1354 = vpop.f32.mrf.mxu0
          %v1355 = vadd.f32 %v1311, %v1354
          %1356 = vmatmul.f32.gmra.mxu0 %v1270
          %v1357 = vpop.f32.mrf.mxu0
          %v1358 = vadd.f32 %v1311, %v1357
          %1359 = vmatmul.f32.gmra.mxu0 %v1271
          %v1360 = vpop.f32.mrf.mxu0
          %v1361 = vadd.f32 %v1311, %v1360
          %1362 = vmatmul.f32.gmra.mxu0 %v1272
          %v1363 = vpop.f32.mrf.mxu0
          %v1364 = vadd.f32 %v1311, %v1363
          %1365 = vmatmul.f32.gmra.mxu0 %v1273
          %v1366 = vpop.f32.mrf.mxu0
          %v1367 = vadd.f32 %v1311, %v1366
          %1368 = vmatmul.f32.gmra.mxu0 %v1274
          %v1369 = vpop.f32.mrf.mxu0
          %v1370 = vadd.f32 %v1311, %v1369
          %1371 = vmatmul.f32.gmra.mxu0 %v1275
          %v1372 = vpop.f32.mrf.mxu0
          %v1373 = vadd.f32 %v1311, %v1372
          %1374 = vmatmul.f32.gmra.mxu0 %v1276
          %v1375 = vpop.f32.mrf.mxu0
          %v1376 = vadd.f32 %v1311, %v1375
          %1377 = vmatmul.f32.gmra.mxu0 %v1277
          %v1378 = vpop.f32.mrf.mxu0
          %v1379 = vadd.f32 %v1311, %v1378
          %1380 = vmatmul.f32.gmra.mxu0 %v1278
          %v1381 = vpop.f32.mrf.mxu0
          %v1382 = vadd.f32 %v1311, %v1381
          %1383 = vmatmul.f32.gmra.mxu0 %v1279
          %v1384 = vpop.f32.mrf.mxu0
          %v1385 = vadd.f32 %v1311, %v1384
          %1386 = vmatmul.f32.gmra.mxu0 %v1280
          %v1387 = vpop.f32.mrf.mxu0
          %v1388 = vadd.f32 %v1311, %v1387
          %1389 = vmatmul.f32.gmra.mxu0 %v1281
          %v1390 = vpop.f32.mrf.mxu0
          %v1391 = vadd.f32 %v1311, %v1390
          %1392 = vmatmul.f32.gmra.mxu0 %v1282
          %v1393 = vpop.f32.mrf.mxu0
          %v1394 = vadd.f32 %v1311, %v1393
          %1395 = vmatmul.f32.gmra.mxu0 %v1283
          %v1396 = vpop.f32.mrf.mxu0
          %v1397 = vadd.f32 %v1311, %v1396
          %1398 = vmatmul.f32.gmra.mxu0 %v1284
          %v1399 = vpop.f32.mrf.mxu0
          %v1400 = vadd.f32 %v1311, %v1399
          %1401 = vmatmul.f32.gmra.mxu0 %v1285
          %v1402 = vpop.f32.mrf.mxu0
          %v1403 = vadd.f32 %v1311, %v1402
          %1404 = vmatmul.f32.gmra.mxu0 %v1286
          %v1405 = vpop.f32.mrf.mxu0
          %v1406 = vadd.f32 %v1311, %v1405
          %1407 = vmatmul.f32.gmra.mxu0 %v1287
          %v1408 = vpop.f32.mrf.mxu0
          %v1409 = vadd.f32 %v1311, %v1408
          %1410 = vmatmul.f32.gmra.mxu0 %v1288
          %v1411 = vpop.f32.mrf.mxu0
          %v1412 = vadd.f32 %v1311, %v1411
          %1413 = vmatmul.f32.gmra.mxu0 %v1289
          %v1414 = vpop.f32.mrf.mxu0
          %v1415 = vadd.f32 %v1311, %v1414
          %1416 = vmatmul.f32.gmra.mxu0 %v1290
          %v1417 = vpop.f32.mrf.mxu0
          %v1418 = vadd.f32 %v1311, %v1417
          %1419 = vmatmul.f32.gmra.mxu0 %v1291
          %v1420 = vpop.f32.mrf.mxu0
          %v1421 = vadd.f32 %v1311, %v1420
          %1422 = vmatmul.f32.gmra.mxu0 %v1292
          %v1423 = vpop.f32.mrf.mxu0
          %v1424 = vadd.f32 %v1311, %v1423
          %1425 = vdwg.mxu0
          %v1426 = vlaneseq
          %v1427 = vshrl.u32 %v1426, 7
          %v1428 = vadd.s32 %v1427, 8
          %v1429 = vadd.s32 %v1427, 16
          %v1430 = vadd.s32 %v1427, 24
          %v1431 = vadd.s32 %v1427, 32
          %v1432 = vadd.s32 %v1427, 40
          %v1433 = vadd.s32 %v1427, 48
          %v1434 = vadd.s32 %v1427, 56
          %v1435 = vadd.s32 %v1427, 64
          %v1436 = vadd.s32 %v1427, 72
          %v1437 = vadd.s32 %v1427, 80
          %v1438 = vadd.s32 %v1427, 88
          %v1439 = vadd.s32 %v1427, 96
          %v1440 = vadd.s32 %v1427, 104
          %v1441 = vadd.s32 %v1427, 112
          %v1442 = vadd.s32 %v1427, 120
          %s1443 = smul.u32 %s56, 128
          %v1444 = vstv %s1443
          %v1445 = vadd.s32 %v1427, %v1444
          %v1446 = vadd.s32 %v1428, %v1444
          %v1447 = vadd.s32 %v1429, %v1444
          %v1448 = vadd.s32 %v1430, %v1444
          %v1449 = vadd.s32 %v1431, %v1444
          %v1450 = vadd.s32 %v1432, %v1444
          %v1451 = vadd.s32 %v1433, %v1444
          %v1452 = vadd.s32 %v1434, %v1444
          %v1453 = vadd.s32 %v1435, %v1444
          %v1454 = vadd.s32 %v1436, %v1444
          %v1455 = vadd.s32 %v1437, %v1444
          %v1456 = vadd.s32 %v1438, %v1444
          %v1457 = vadd.s32 %v1439, %v1444
          %v1458 = vadd.s32 %v1440, %v1444
          %v1459 = vadd.s32 %v1441, %v1444
          %v1460 = vadd.s32 %v1442, %v1444
          %v1461 = vld [vmem:[%s622] sm:$0x3]
          %v1462 = vperm.slane %v1461, 0
          %v1463 = vperm.slane %v1461, 1
          %vm1464 = vcmp.eq.s32.totalorder %v1445, %v1462
          %vm1465 = vcmp.eq.s32.totalorder %v1445, %v1463
          %vm1466 = vcmp.eq.s32.totalorder %v1446, %v1462
          %vm1467 = vcmp.eq.s32.totalorder %v1446, %v1463
          %vm1468 = vcmp.eq.s32.totalorder %v1447, %v1462
          %vm1469 = vcmp.eq.s32.totalorder %v1447, %v1463
          %vm1470 = vcmp.eq.s32.totalorder %v1448, %v1462
          %vm1471 = vcmp.eq.s32.totalorder %v1448, %v1463
          %vm1472 = vcmp.eq.s32.totalorder %v1449, %v1462
          %vm1473 = vcmp.eq.s32.totalorder %v1449, %v1463
          %vm1474 = vcmp.eq.s32.totalorder %v1450, %v1462
          %vm1475 = vcmp.eq.s32.totalorder %v1450, %v1463
          %vm1476 = vcmp.eq.s32.totalorder %v1451, %v1462
          %vm1477 = vcmp.eq.s32.totalorder %v1451, %v1463
          %vm1478 = vcmp.eq.s32.totalorder %v1452, %v1462
          %vm1479 = vcmp.eq.s32.totalorder %v1452, %v1463
          %vm1480 = vcmp.eq.s32.totalorder %v1453, %v1462
          %vm1481 = vcmp.eq.s32.totalorder %v1453, %v1463
          %vm1482 = vcmp.eq.s32.totalorder %v1454, %v1462
          %vm1483 = vcmp.eq.s32.totalorder %v1454, %v1463
          %vm1484 = vcmp.eq.s32.totalorder %v1455, %v1462
          %vm1485 = vcmp.eq.s32.totalorder %v1455, %v1463
          %vm1486 = vcmp.eq.s32.totalorder %v1456, %v1462
          %vm1487 = vcmp.eq.s32.totalorder %v1456, %v1463
          %vm1488 = vcmp.eq.s32.totalorder %v1457, %v1462
          %vm1489 = vcmp.eq.s32.totalorder %v1457, %v1463
          %vm1490 = vcmp.eq.s32.totalorder %v1458, %v1462
          %vm1491 = vcmp.eq.s32.totalorder %v1458, %v1463
          %vm1492 = vcmp.eq.s32.totalorder %v1459, %v1462
          %vm1493 = vcmp.eq.s32.totalorder %v1459, %v1463
          %vm1494 = vcmp.eq.s32.totalorder %v1460, %v1462
          %vm1495 = vcmp.eq.s32.totalorder %v1460, %v1463
          %v1496 = vsel %vm1464, 1, 0
          %v1497 = vsel %vm1465, 1, 0
          %v1498 = vsel %vm1466, 1, 0
          %v1499 = vsel %vm1467, 1, 0
          %v1500 = vsel %vm1468, 1, 0
          %v1501 = vsel %vm1469, 1, 0
          %v1502 = vsel %vm1470, 1, 0
          %v1503 = vsel %vm1471, 1, 0
          %v1504 = vsel %vm1472, 1, 0
          %v1505 = vsel %vm1473, 1, 0
          %v1506 = vsel %vm1474, 1, 0
          %v1507 = vsel %vm1475, 1, 0
          %v1508 = vsel %vm1476, 1, 0
          %v1509 = vsel %vm1477, 1, 0
          %v1510 = vsel %vm1478, 1, 0
          %v1511 = vsel %vm1479, 1, 0
          %v1512 = vsel %vm1480, 1, 0
          %v1513 = vsel %vm1481, 1, 0
          %v1514 = vsel %vm1482, 1, 0
          %v1515 = vsel %vm1483, 1, 0
          %v1516 = vsel %vm1484, 1, 0
          %v1517 = vsel %vm1485, 1, 0
          %v1518 = vsel %vm1486, 1, 0
          %v1519 = vsel %vm1487, 1, 0
          %v1520 = vsel %vm1488, 1, 0
          %v1521 = vsel %vm1489, 1, 0
          %v1522 = vsel %vm1490, 1, 0
          %v1523 = vsel %vm1491, 1, 0
          %v1524 = vsel %vm1492, 1, 0
          %v1525 = vsel %vm1493, 1, 0
          %v1526 = vsel %vm1494, 1, 0
          %v1527 = vsel %vm1495, 1, 0
          %v1528 = vcvt.s32.f32 %v1496
          %v1529 = vcvt.s32.f32 %v1497
          %v1530 = vcvt.s32.f32 %v1498
          %v1531 = vcvt.s32.f32 %v1499
          %v1532 = vcvt.s32.f32 %v1500
          %v1533 = vcvt.s32.f32 %v1501
          %v1534 = vcvt.s32.f32 %v1502
          %v1535 = vcvt.s32.f32 %v1503
          %v1536 = vcvt.s32.f32 %v1504
          %v1537 = vcvt.s32.f32 %v1505
          %v1538 = vcvt.s32.f32 %v1506
          %v1539 = vcvt.s32.f32 %v1507
          %v1540 = vcvt.s32.f32 %v1508
          %v1541 = vcvt.s32.f32 %v1509
          %v1542 = vcvt.s32.f32 %v1510
          %v1543 = vcvt.s32.f32 %v1511
          %v1544 = vcvt.s32.f32 %v1512
          %v1545 = vcvt.s32.f32 %v1513
          %v1546 = vcvt.s32.f32 %v1514
          %v1547 = vcvt.s32.f32 %v1515
          %v1548 = vcvt.s32.f32 %v1516
          %v1549 = vcvt.s32.f32 %v1517
          %v1550 = vcvt.s32.f32 %v1518
          %v1551 = vcvt.s32.f32 %v1519
          %v1552 = vcvt.s32.f32 %v1520
          %v1553 = vcvt.s32.f32 %v1521
          %v1554 = vcvt.s32.f32 %v1522
          %v1555 = vcvt.s32.f32 %v1523
          %v1556 = vcvt.s32.f32 %v1524
          %v1557 = vcvt.s32.f32 %v1525
          %v1558 = vcvt.s32.f32 %v1526
          %v1559 = vcvt.s32.f32 %v1527
          %v1560 = vld [vmem:[#allocation2] sm:$0xff]
          %v1561 = vld [vmem:[#allocation2 + $0x8] sm:$0xff]
          %v1562 = vld [vmem:[#allocation2 + $0x10] sm:$0xff]
          %v1563 = vld [vmem:[#allocation2 + $0x18] sm:$0xff]
          %v1564 = vld [vmem:[#allocation2 + $0x20] sm:$0xff]
          %v1565 = vld [vmem:[#allocation2 + $0x28] sm:$0xff]
          %v1566 = vld [vmem:[#allocation2 + $0x30] sm:$0xff]
          %v1567 = vld [vmem:[#allocation2 + $0x38] sm:$0xff]
          %v1568 = vld [vmem:[#allocation2 + $0x40] sm:$0xff]
          %v1569 = vld [vmem:[#allocation2 + $0x48] sm:$0xff]
          %v1570 = vld [vmem:[#allocation2 + $0x50] sm:$0xff]
          %v1571 = vld [vmem:[#allocation2 + $0x58] sm:$0xff]
          %v1572 = vld [vmem:[#allocation2 + $0x60] sm:$0xff]
          %v1573 = vld [vmem:[#allocation2 + $0x68] sm:$0xff]
          %v1574 = vld [vmem:[#allocation2 + $0x70] sm:$0xff]
          %v1575 = vld [vmem:[#allocation2 + $0x78] sm:$0xff]
          %1576 = vmatpush.msra.mxu0 %v1376
          %1577 = vmatpush.msra.mxu0 %v1373
          %1578 = vmatpush.msra.mxu0 %v1370
          %1579 = vmatpush.msra.mxu0 %v1367
          %1580 = vmatpush.msra.mxu0 %v1364
          %1581 = vmatpush.msra.mxu0 %v1361
          %1582 = vmatpush.msra.mxu0 %v1358
          %1583 = vmatpush.msra.mxu0 %v1355
          %1584 = vmatpush.msra.mxu0 %v1352
          %1585 = vmatpush.msra.mxu0 %v1349
          %1586 = vmatpush.msra.mxu0 %v1346
          %1587 = vmatpush.msra.mxu0 %v1343
          %1588 = vmatpush.msra.mxu0 %v1340
          %1589 = vmatpush.msra.mxu0 %v1337
          %1590 = vmatpush.msra.mxu0 %v1334
          %1591 = vmatpush.msra.mxu0 %v1331
          %1592 = vmatmul.f32.gmra.mxu0 %v1528
          %v1593 = vpop.f32.mrf.mxu0
          %v1594 = vadd.f32 0.0, %v1593
          %1595 = vmatmul.f32.gmra.mxu0 %v1530
          %v1596 = vpop.f32.mrf.mxu0
          %v1597 = vadd.f32 0.0, %v1596
          %1598 = vmatmul.f32.gmra.mxu0 %v1532
          %v1599 = vpop.f32.mrf.mxu0
          %v1600 = vadd.f32 0.0, %v1599
          %1601 = vmatmul.f32.gmra.mxu0 %v1534
          %v1602 = vpop.f32.mrf.mxu0
          %v1603 = vadd.f32 0.0, %v1602
          %1604 = vmatmul.f32.gmra.mxu0 %v1536
          %v1605 = vpop.f32.mrf.mxu0
          %v1606 = vadd.f32 0.0, %v1605
          %1607 = vmatmul.f32.gmra.mxu0 %v1538
          %v1608 = vpop.f32.mrf.mxu0
          %v1609 = vadd.f32 0.0, %v1608
          %1610 = vmatmul.f32.gmra.mxu0 %v1540
          %v1611 = vpop.f32.mrf.mxu0
          %v1612 = vadd.f32 0.0, %v1611
          %1613 = vmatmul.f32.gmra.mxu0 %v1542
          %v1614 = vpop.f32.mrf.mxu0
          %v1615 = vadd.f32 0.0, %v1614
          %1616 = vmatmul.f32.gmra.mxu0 %v1544
          %v1617 = vpop.f32.mrf.mxu0
          %v1618 = vadd.f32 0.0, %v1617
          %1619 = vmatmul.f32.gmra.mxu0 %v1546
          %v1620 = vpop.f32.mrf.mxu0
          %v1621 = vadd.f32 0.0, %v1620
          %1622 = vmatmul.f32.gmra.mxu0 %v1548
          %v1623 = vpop.f32.mrf.mxu0
          %v1624 = vadd.f32 0.0, %v1623
          %1625 = vmatmul.f32.gmra.mxu0 %v1550
          %v1626 = vpop.f32.mrf.mxu0
          %v1627 = vadd.f32 0.0, %v1626
          %1628 = vmatmul.f32.gmra.mxu0 %v1552
          %v1629 = vpop.f32.mrf.mxu0
          %v1630 = vadd.f32 0.0, %v1629
          %1631 = vmatmul.f32.gmra.mxu0 %v1554
          %v1632 = vpop.f32.mrf.mxu0
          %v1633 = vadd.f32 0.0, %v1632
          %1634 = vmatmul.f32.gmra.mxu0 %v1556
          %v1635 = vpop.f32.mrf.mxu0
          %v1636 = vadd.f32 0.0, %v1635
          %1637 = vmatmul.f32.gmra.mxu0 %v1558
          %v1638 = vpop.f32.mrf.mxu0
          %v1639 = vadd.f32 0.0, %v1638
          %1640 = vdwg.mxu0
          %1641 = vmatpush.msra.mxu0 %v1424
          %1642 = vmatpush.msra.mxu0 %v1421
          %1643 = vmatpush.msra.mxu0 %v1418
          %1644 = vmatpush.msra.mxu0 %v1415
          %1645 = vmatpush.msra.mxu0 %v1412
          %1646 = vmatpush.msra.mxu0 %v1409
          %1647 = vmatpush.msra.mxu0 %v1406
          %1648 = vmatpush.msra.mxu0 %v1403
          %1649 = vmatpush.msra.mxu0 %v1400
          %1650 = vmatpush.msra.mxu0 %v1397
          %1651 = vmatpush.msra.mxu0 %v1394
          %1652 = vmatpush.msra.mxu0 %v1391
          %1653 = vmatpush.msra.mxu0 %v1388
          %1654 = vmatpush.msra.mxu0 %v1385
          %1655 = vmatpush.msra.mxu0 %v1382
          %1656 = vmatpush.msra.mxu0 %v1379
          %1657 = vmatmul.f32.gmra.mxu0 %v1529
          %v1658 = vpop.f32.mrf.mxu0
          %v1659 = vadd.f32 %v1594, %v1658
          %1660 = vmatmul.f32.gmra.mxu0 %v1531
          %v1661 = vpop.f32.mrf.mxu0
          %v1662 = vadd.f32 %v1597, %v1661
          %1663 = vmatmul.f32.gmra.mxu0 %v1533
          %v1664 = vpop.f32.mrf.mxu0
          %v1665 = vadd.f32 %v1600, %v1664
          %1666 = vmatmul.f32.gmra.mxu0 %v1535
          %v1667 = vpop.f32.mrf.mxu0
          %v1668 = vadd.f32 %v1603, %v1667
          %1669 = vmatmul.f32.gmra.mxu0 %v1537
          %v1670 = vpop.f32.mrf.mxu0
          %v1671 = vadd.f32 %v1606, %v1670
          %1672 = vmatmul.f32.gmra.mxu0 %v1539
          %v1673 = vpop.f32.mrf.mxu0
          %v1674 = vadd.f32 %v1609, %v1673
          %1675 = vmatmul.f32.gmra.mxu0 %v1541
          %v1676 = vpop.f32.mrf.mxu0
          %v1677 = vadd.f32 %v1612, %v1676
          %1678 = vmatmul.f32.gmra.mxu0 %v1543
          %v1679 = vpop.f32.mrf.mxu0
          %v1680 = vadd.f32 %v1615, %v1679
          %1681 = vmatmul.f32.gmra.mxu0 %v1545
          %v1682 = vpop.f32.mrf.mxu0
          %v1683 = vadd.f32 %v1618, %v1682
          %1684 = vmatmul.f32.gmra.mxu0 %v1547
          %v1685 = vpop.f32.mrf.mxu0
          %v1686 = vadd.f32 %v1621, %v1685
          %1687 = vmatmul.f32.gmra.mxu0 %v1549
          %v1688 = vpop.f32.mrf.mxu0
          %v1689 = vadd.f32 %v1624, %v1688
          %1690 = vmatmul.f32.gmra.mxu0 %v1551
          %v1691 = vpop.f32.mrf.mxu0
          %v1692 = vadd.f32 %v1627, %v1691
          %1693 = vmatmul.f32.gmra.mxu0 %v1553
          %v1694 = vpop.f32.mrf.mxu0
          %v1695 = vadd.f32 %v1630, %v1694
          %1696 = vmatmul.f32.gmra.mxu0 %v1555
          %v1697 = vpop.f32.mrf.mxu0
          %v1698 = vadd.f32 %v1633, %v1697
          %1699 = vmatmul.f32.gmra.mxu0 %v1557
          %v1700 = vpop.f32.mrf.mxu0
          %v1701 = vadd.f32 %v1636, %v1700
          %1702 = vmatmul.f32.gmra.mxu0 %v1559
          %v1703 = vpop.f32.mrf.mxu0
          %v1704 = vadd.f32 %v1639, %v1703
          %1705 = vdwg.mxu0
          %v1706 = vadd.f32 %v1560, %v1659
          %v1707 = vadd.f32 %v1561, %v1662
          %v1708 = vadd.f32 %v1562, %v1665
          %v1709 = vadd.f32 %v1563, %v1668
          %v1710 = vadd.f32 %v1564, %v1671
          %v1711 = vadd.f32 %v1565, %v1674
          %v1712 = vadd.f32 %v1566, %v1677
          %v1713 = vadd.f32 %v1567, %v1680
          %v1714 = vadd.f32 %v1568, %v1683
          %v1715 = vadd.f32 %v1569, %v1686
          %v1716 = vadd.f32 %v1570, %v1689
          %v1717 = vadd.f32 %v1571, %v1692
          %v1718 = vadd.f32 %v1572, %v1695
          %v1719 = vadd.f32 %v1573, %v1698
          %v1720 = vadd.f32 %v1574, %v1701
          %v1721 = vadd.f32 %v1575, %v1704
          %1722 = vst [vmem:[#allocation2] sm:$0xff] %v1706
          %1723 = vst [vmem:[#allocation2 + $0x8] sm:$0xff] %v1707
          %1724 = vst [vmem:[#allocation2 + $0x10] sm:$0xff] %v1708
          %1725 = vst [vmem:[#allocation2 + $0x18] sm:$0xff] %v1709
          %1726 = vst [vmem:[#allocation2 + $0x20] sm:$0xff] %v1710
          %1727 = vst [vmem:[#allocation2 + $0x28] sm:$0xff] %v1711
          %1728 = vst [vmem:[#allocation2 + $0x30] sm:$0xff] %v1712
          %1729 = vst [vmem:[#allocation2 + $0x38] sm:$0xff] %v1713
          %1730 = vst [vmem:[#allocation2 + $0x40] sm:$0xff] %v1714
          %1731 = vst [vmem:[#allocation2 + $0x48] sm:$0xff] %v1715
          %1732 = vst [vmem:[#allocation2 + $0x50] sm:$0xff] %v1716
          %1733 = vst [vmem:[#allocation2 + $0x58] sm:$0xff] %v1717
          %1734 = vst [vmem:[#allocation2 + $0x60] sm:$0xff] %v1718
          %1735 = vst [vmem:[#allocation2 + $0x68] sm:$0xff] %v1719
          %1736 = vst [vmem:[#allocation2 + $0x70] sm:$0xff] %v1720
          %1737 = vst [vmem:[#allocation2 + $0x78] sm:$0xff] %v1721
        $region124: #{tpu_custom_call.1} parent=67 // pred_fallthru
          _
        %p1738 = scmp.eq.s32.totalorder %s57, 3
        // Predicated region
        $region125: #{tpu_custom_call.1} parent=67 // pred_check
          %p1739 = pneg %p1738
        $region126: #{tpu_custom_call.1} parent=67 // pred_check_branch
          %1741 = sbr.rel (%p1739) target = $region128
        $region127: #{tpu_custom_call.1} parent=67 // pred_region
          %v1742 = vld [vmem:[%s632] sm:$0xff]
          %v1743 = vld [vmem:[%s632 + $0x8] sm:$0xff]
          %v1744 = vld [vmem:[%s632 + $0x10] sm:$0xff]
          %v1745 = vld [vmem:[%s632 + $0x18] sm:$0xff]
          %v1746 = vld [vmem:[%s632 + $0x20] sm:$0xff]
          %v1747 = vld [vmem:[%s632 + $0x28] sm:$0xff]
          %v1748 = vld [vmem:[%s632 + $0x30] sm:$0xff]
          %v1749 = vld [vmem:[%s632 + $0x38] sm:$0xff]
          %v1750 = vld [vmem:[%s632 + $0x40] sm:$0xff]
          %v1751 = vld [vmem:[%s632 + $0x48] sm:$0xff]
          %v1752 = vld [vmem:[%s632 + $0x50] sm:$0xff]
          %v1753 = vld [vmem:[%s632 + $0x58] sm:$0xff]
          %v1754 = vld [vmem:[%s632 + $0x60] sm:$0xff]
          %v1755 = vld [vmem:[%s632 + $0x68] sm:$0xff]
          %v1756 = vld [vmem:[%s632 + $0x70] sm:$0xff]
          %v1757 = vld [vmem:[%s632 + $0x78] sm:$0xff]
          %v1758 = vld [vmem:[#allocation18] sm:$0xff]
          %v1759 = vld [vmem:[#allocation18 + $0x8] sm:$0xff]
          %v1760 = vld [vmem:[#allocation18 + $0x10] sm:$0xff]
          %v1761 = vld [vmem:[#allocation18 + $0x18] sm:$0xff]
          %v1762 = vld [vmem:[#allocation18 + $0x20] sm:$0xff]
          %v1763 = vld [vmem:[#allocation18 + $0x28] sm:$0xff]
          %v1764 = vld [vmem:[#allocation18 + $0x30] sm:$0xff]
          %v1765 = vld [vmem:[#allocation18 + $0x38] sm:$0xff]
          %v1766 = vld [vmem:[#allocation18 + $0x40] sm:$0xff]
          %v1767 = vld [vmem:[#allocation18 + $0x48] sm:$0xff]
          %v1768 = vld [vmem:[#allocation18 + $0x50] sm:$0xff]
          %v1769 = vld [vmem:[#allocation18 + $0x58] sm:$0xff]
          %v1770 = vld [vmem:[#allocation18 + $0x60] sm:$0xff]
          %v1771 = vld [vmem:[#allocation18 + $0x68] sm:$0xff]
          %v1772 = vld [vmem:[#allocation18 + $0x70] sm:$0xff]
          %v1773 = vld [vmem:[#allocation18 + $0x78] sm:$0xff]
          %v1774 = vld [vmem:[#allocation2] sm:$0xff]
          %v1775 = vld [vmem:[#allocation2 + $0x8] sm:$0xff]
          %v1776 = vld [vmem:[#allocation2 + $0x10] sm:$0xff]
          %v1777 = vld [vmem:[#allocation2 + $0x18] sm:$0xff]
          %v1778 = vld [vmem:[#allocation2 + $0x20] sm:$0xff]
          %v1779 = vld [vmem:[#allocation2 + $0x28] sm:$0xff]
          %v1780 = vld [vmem:[#allocation2 + $0x30] sm:$0xff]
          %v1781 = vld [vmem:[#allocation2 + $0x38] sm:$0xff]
          %v1782 = vld [vmem:[#allocation2 + $0x40] sm:$0xff]
          %v1783 = vld [vmem:[#allocation2 + $0x48] sm:$0xff]
          %v1784 = vld [vmem:[#allocation2 + $0x50] sm:$0xff]
          %v1785 = vld [vmem:[#allocation2 + $0x58] sm:$0xff]
          %v1786 = vld [vmem:[#allocation2 + $0x60] sm:$0xff]
          %v1787 = vld [vmem:[#allocation2 + $0x68] sm:$0xff]
          %v1788 = vld [vmem:[#allocation2 + $0x70] sm:$0xff]
          %v1789 = vld [vmem:[#allocation2 + $0x78] sm:$0xff]
          %v1790 = vld [vmem:[#allocation20] sm:$0xff]
          %v1791 = vld [vmem:[#allocation20 + $0x8] sm:$0xff]
          %v1792 = vld [vmem:[#allocation20 + $0x10] sm:$0xff]
          %v1793 = vld [vmem:[#allocation20 + $0x18] sm:$0xff]
          %v1794 = vld [vmem:[#allocation20 + $0x20] sm:$0xff]
          %v1795 = vld [vmem:[#allocation20 + $0x28] sm:$0xff]
          %v1796 = vld [vmem:[#allocation20 + $0x30] sm:$0xff]
          %v1797 = vld [vmem:[#allocation20 + $0x38] sm:$0xff]
          %v1798 = vld [vmem:[#allocation20 + $0x40] sm:$0xff]
          %v1799 = vld [vmem:[#allocation20 + $0x48] sm:$0xff]
          %v1800 = vld [vmem:[#allocation20 + $0x50] sm:$0xff]
          %v1801 = vld [vmem:[#allocation20 + $0x58] sm:$0xff]
          %v1802 = vld [vmem:[#allocation20 + $0x60] sm:$0xff]
          %v1803 = vld [vmem:[#allocation20 + $0x68] sm:$0xff]
          %v1804 = vld [vmem:[#allocation20 + $0x70] sm:$0xff]
          %v1805 = vld [vmem:[#allocation20 + $0x78] sm:$0xff]
          %1806 = vmatpush.msra.mxu0 %v1805
          %1807 = vmatpush.msra.mxu0 %v1804
          %1808 = vmatpush.msra.mxu0 %v1803
          %1809 = vmatpush.msra.mxu0 %v1802
          %1810 = vmatpush.msra.mxu0 %v1801
          %1811 = vmatpush.msra.mxu0 %v1800
          %1812 = vmatpush.msra.mxu0 %v1799
          %1813 = vmatpush.msra.mxu0 %v1798
          %1814 = vmatpush.msra.mxu0 %v1797
          %1815 = vmatpush.msra.mxu0 %v1796
          %1816 = vmatpush.msra.mxu0 %v1795
          %1817 = vmatpush.msra.mxu0 %v1794
          %1818 = vmatpush.msra.mxu0 %v1793
          %1819 = vmatpush.msra.mxu0 %v1792
          %1820 = vmatpush.msra.mxu0 %v1791
          %1821 = vmatpush.msra.mxu0 %v1790
          %1822 = vmatmul.f32.gmra.mxu0 %v1774
          %v1823 = vpop.f32.mrf.mxu0
          %v1824 = vadd.f32 0.0, %v1823
          %1825 = vmatmul.f32.gmra.mxu0 %v1775
          %v1826 = vpop.f32.mrf.mxu0
          %v1827 = vadd.f32 0.0, %v1826
          %1828 = vmatmul.f32.gmra.mxu0 %v1776
          %v1829 = vpop.f32.mrf.mxu0
          %v1830 = vadd.f32 0.0, %v1829
          %1831 = vmatmul.f32.gmra.mxu0 %v1777
          %v1832 = vpop.f32.mrf.mxu0
          %v1833 = vadd.f32 0.0, %v1832
          %1834 = vmatmul.f32.gmra.mxu0 %v1778
          %v1835 = vpop.f32.mrf.mxu0
          %v1836 = vadd.f32 0.0, %v1835
          %1837 = vmatmul.f32.gmra.mxu0 %v1779
          %v1838 = vpop.f32.mrf.mxu0
          %v1839 = vadd.f32 0.0, %v1838
          %1840 = vmatmul.f32.gmra.mxu0 %v1780
          %v1841 = vpop.f32.mrf.mxu0
          %v1842 = vadd.f32 0.0, %v1841
          %1843 = vmatmul.f32.gmra.mxu0 %v1781
          %v1844 = vpop.f32.mrf.mxu0
          %v1845 = vadd.f32 0.0, %v1844
          %1846 = vmatmul.f32.gmra.mxu0 %v1782
          %v1847 = vpop.f32.mrf.mxu0
          %v1848 = vadd.f32 0.0, %v1847
          %1849 = vmatmul.f32.gmra.mxu0 %v1783
          %v1850 = vpop.f32.mrf.mxu0
          %v1851 = vadd.f32 0.0, %v1850
          %1852 = vmatmul.f32.gmra.mxu0 %v1784
          %v1853 = vpop.f32.mrf.mxu0
          %v1854 = vadd.f32 0.0, %v1853
          %1855 = vmatmul.f32.gmra.mxu0 %v1785
          %v1856 = vpop.f32.mrf.mxu0
          %v1857 = vadd.f32 0.0, %v1856
          %1858 = vmatmul.f32.gmra.mxu0 %v1786
          %v1859 = vpop.f32.mrf.mxu0
          %v1860 = vadd.f32 0.0, %v1859
          %1861 = vmatmul.f32.gmra.mxu0 %v1787
          %v1862 = vpop.f32.mrf.mxu0
          %v1863 = vadd.f32 0.0, %v1862
          %1864 = vmatmul.f32.gmra.mxu0 %v1788
          %v1865 = vpop.f32.mrf.mxu0
          %v1866 = vadd.f32 0.0, %v1865
          %1867 = vmatmul.f32.gmra.mxu0 %v1789
          %v1868 = vpop.f32.mrf.mxu0
          %v1869 = vadd.f32 0.0, %v1868
          %1870 = vdwg.mxu0
          %1871 = vmatpush.msra.mxu0 %v1773
          %1872 = vmatpush.msra.mxu0 %v1772
          %1873 = vmatpush.msra.mxu0 %v1771
          %1874 = vmatpush.msra.mxu0 %v1770
          %1875 = vmatpush.msra.mxu0 %v1769
          %1876 = vmatpush.msra.mxu0 %v1768
          %1877 = vmatpush.msra.mxu0 %v1767
          %1878 = vmatpush.msra.mxu0 %v1766
          %1879 = vmatpush.msra.mxu0 %v1765
          %1880 = vmatpush.msra.mxu0 %v1764
          %1881 = vmatpush.msra.mxu0 %v1763
          %1882 = vmatpush.msra.mxu0 %v1762
          %1883 = vmatpush.msra.mxu0 %v1761
          %1884 = vmatpush.msra.mxu0 %v1760
          %1885 = vmatpush.msra.mxu0 %v1759
          %1886 = vmatpush.msra.mxu0 %v1758
          %1887 = vmatmul.f32.gmra.mxu0 %v1742
          %v1888 = vpop.f32.mrf.mxu0
          %v1889 = vadd.f32 %v1824, %v1888
          %1890 = vmatmul.f32.gmra.mxu0 %v1743
          %v1891 = vpop.f32.mrf.mxu0
          %v1892 = vadd.f32 %v1827, %v1891
          %1893 = vmatmul.f32.gmra.mxu0 %v1744
          %v1894 = vpop.f32.mrf.mxu0
          %v1895 = vadd.f32 %v1830, %v1894
          %1896 = vmatmul.f32.gmra.mxu0 %v1745
          %v1897 = vpop.f32.mrf.mxu0
          %v1898 = vadd.f32 %v1833, %v1897
          %1899 = vmatmul.f32.gmra.mxu0 %v1746
          %v1900 = vpop.f32.mrf.mxu0
          %v1901 = vadd.f32 %v1836, %v1900
          %1902 = vmatmul.f32.gmra.mxu0 %v1747
          %v1903 = vpop.f32.mrf.mxu0
          %v1904 = vadd.f32 %v1839, %v1903
          %1905 = vmatmul.f32.gmra.mxu0 %v1748
          %v1906 = vpop.f32.mrf.mxu0
          %v1907 = vadd.f32 %v1842, %v1906
          %1908 = vmatmul.f32.gmra.mxu0 %v1749
          %v1909 = vpop.f32.mrf.mxu0
          %v1910 = vadd.f32 %v1845, %v1909
          %1911 = vmatmul.f32.gmra.mxu0 %v1750
          %v1912 = vpop.f32.mrf.mxu0
          %v1913 = vadd.f32 %v1848, %v1912
          %1914 = vmatmul.f32.gmra.mxu0 %v1751
          %v1915 = vpop.f32.mrf.mxu0
          %v1916 = vadd.f32 %v1851, %v1915
          %1917 = vmatmul.f32.gmra.mxu0 %v1752
          %v1918 = vpop.f32.mrf.mxu0
          %v1919 = vadd.f32 %v1854, %v1918
          %1920 = vmatmul.f32.gmra.mxu0 %v1753
          %v1921 = vpop.f32.mrf.mxu0
          %v1922 = vadd.f32 %v1857, %v1921
          %1923 = vmatmul.f32.gmra.mxu0 %v1754
          %v1924 = vpop.f32.mrf.mxu0
          %v1925 = vadd.f32 %v1860, %v1924
          %1926 = vmatmul.f32.gmra.mxu0 %v1755
          %v1927 = vpop.f32.mrf.mxu0
          %v1928 = vadd.f32 %v1863, %v1927
          %1929 = vmatmul.f32.gmra.mxu0 %v1756
          %v1930 = vpop.f32.mrf.mxu0
          %v1931 = vadd.f32 %v1866, %v1930
          %1932 = vmatmul.f32.gmra.mxu0 %v1757
          %v1933 = vpop.f32.mrf.mxu0
          %v1934 = vadd.f32 %v1869, %v1933
          %1935 = vdwg.mxu0
          %v1936 = vld [vmem:[#allocation21] sm:$0x1]
          %v1938 = vperm.slane %v1936, 0
          %v1940 = vadd.f32 %v1889, %v1938
          %v1941 = vadd.f32 %v1892, %v1938
          %v1942 = vadd.f32 %v1895, %v1938
          %v1943 = vadd.f32 %v1898, %v1938
          %v1944 = vadd.f32 %v1901, %v1938
          %v1945 = vadd.f32 %v1904, %v1938
          %v1946 = vadd.f32 %v1907, %v1938
          %v1947 = vadd.f32 %v1910, %v1938
          %v1948 = vadd.f32 %v1913, %v1938
          %v1949 = vadd.f32 %v1916, %v1938
          %v1950 = vadd.f32 %v1919, %v1938
          %v1951 = vadd.f32 %v1922, %v1938
          %v1952 = vadd.f32 %v1925, %v1938
          %v1953 = vadd.f32 %v1928, %v1938
          %v1954 = vadd.f32 %v1931, %v1938
          %v1955 = vadd.f32 %v1934, %v1938
          %v1956 = vmax.f32 %v1940, 0.0
          %v1957 = vmax.f32 %v1941, 0.0
          %v1958 = vmax.f32 %v1942, 0.0
          %v1959 = vmax.f32 %v1943, 0.0
          %v1960 = vmax.f32 %v1944, 0.0
          %v1961 = vmax.f32 %v1945, 0.0
          %v1962 = vmax.f32 %v1946, 0.0
          %v1963 = vmax.f32 %v1947, 0.0
          %v1964 = vmax.f32 %v1948, 0.0
          %v1965 = vmax.f32 %v1949, 0.0
          %v1966 = vmax.f32 %v1950, 0.0
          %v1967 = vmax.f32 %v1951, 0.0
          %v1968 = vmax.f32 %v1952, 0.0
          %v1969 = vmax.f32 %v1953, 0.0
          %v1970 = vmax.f32 %v1954, 0.0
          %v1971 = vmax.f32 %v1955, 0.0
          %v1972 = vld [vmem:[#allocation23] sm:$0xff]
          %v1973 = vld [vmem:[#allocation23 + $0x8] sm:$0xff]
          %v1974 = vld [vmem:[#allocation23 + $0x10] sm:$0xff]
          %v1975 = vld [vmem:[#allocation23 + $0x18] sm:$0xff]
          %v1976 = vld [vmem:[#allocation23 + $0x20] sm:$0xff]
          %v1977 = vld [vmem:[#allocation23 + $0x28] sm:$0xff]
          %v1978 = vld [vmem:[#allocation23 + $0x30] sm:$0xff]
          %v1979 = vld [vmem:[#allocation23 + $0x38] sm:$0xff]
          %v1980 = vld [vmem:[#allocation23 + $0x40] sm:$0xff]
          %v1981 = vld [vmem:[#allocation23 + $0x48] sm:$0xff]
          %v1982 = vld [vmem:[#allocation23 + $0x50] sm:$0xff]
          %v1983 = vld [vmem:[#allocation23 + $0x58] sm:$0xff]
          %v1984 = vld [vmem:[#allocation23 + $0x60] sm:$0xff]
          %v1985 = vld [vmem:[#allocation23 + $0x68] sm:$0xff]
          %v1986 = vld [vmem:[#allocation23 + $0x70] sm:$0xff]
          %v1987 = vld [vmem:[#allocation23 + $0x78] sm:$0xff]
          %v1988 = vld [vmem:[#allocation24] sm:$0x1]
          %v1990 = vperm.slane %v1988, 0
          %1992 = vmatpush.msra.mxu0 %v1987
          %1993 = vmatpush.msra.mxu0 %v1986
          %1994 = vmatpush.msra.mxu0 %v1985
          %1995 = vmatpush.msra.mxu0 %v1984
          %1996 = vmatpush.msra.mxu0 %v1983
          %1997 = vmatpush.msra.mxu0 %v1982
          %1998 = vmatpush.msra.mxu0 %v1981
          %1999 = vmatpush.msra.mxu0 %v1980
          %2000 = vmatpush.msra.mxu0 %v1979
          %2001 = vmatpush.msra.mxu0 %v1978
          %2002 = vmatpush.msra.mxu0 %v1977
          %2003 = vmatpush.msra.mxu0 %v1976
          %2004 = vmatpush.msra.mxu0 %v1975
          %2005 = vmatpush.msra.mxu0 %v1974
          %2006 = vmatpush.msra.mxu0 %v1973
          %2007 = vmatpush.msra.mxu0 %v1972
          %2008 = vmatmul.f32.gmra.mxu0 %v1956
          %v2009 = vpop.f32.mrf.mxu0
          %v2010 = vadd.f32 %v1990, %v2009
          %2011 = vmatmul.f32.gmra.mxu0 %v1957
          %v2012 = vpop.f32.mrf.mxu0
          %v2013 = vadd.f32 %v1990, %v2012
          %2014 = vmatmul.f32.gmra.mxu0 %v1958
          %v2015 = vpop.f32.mrf.mxu0
          %v2016 = vadd.f32 %v1990, %v2015
          %2017 = vmatmul.f32.gmra.mxu0 %v1959
          %v2018 = vpop.f32.mrf.mxu0
          %v2019 = vadd.f32 %v1990, %v2018
          %2020 = vmatmul.f32.gmra.mxu0 %v1960
          %v2021 = vpop.f32.mrf.mxu0
          %v2022 = vadd.f32 %v1990, %v2021
          %2023 = vmatmul.f32.gmra.mxu0 %v1961
          %v2024 = vpop.f32.mrf.mxu0
          %v2025 = vadd.f32 %v1990, %v2024
          %2026 = vmatmul.f32.gmra.mxu0 %v1962
          %v2027 = vpop.f32.mrf.mxu0
          %v2028 = vadd.f32 %v1990, %v2027
          %2029 = vmatmul.f32.gmra.mxu0 %v1963
          %v2030 = vpop.f32.mrf.mxu0
          %v2031 = vadd.f32 %v1990, %v2030
          %2032 = vmatmul.f32.gmra.mxu0 %v1964
          %v2033 = vpop.f32.mrf.mxu0
          %v2034 = vadd.f32 %v1990, %v2033
          %2035 = vmatmul.f32.gmra.mxu0 %v1965
          %v2036 = vpop.f32.mrf.mxu0
          %v2037 = vadd.f32 %v1990, %v2036
          %2038 = vmatmul.f32.gmra.mxu0 %v1966
          %v2039 = vpop.f32.mrf.mxu0
          %v2040 = vadd.f32 %v1990, %v2039
          %2041 = vmatmul.f32.gmra.mxu0 %v1967
          %v2042 = vpop.f32.mrf.mxu0
          %v2043 = vadd.f32 %v1990, %v2042
          %2044 = vmatmul.f32.gmra.mxu0 %v1968
          %v2045 = vpop.f32.mrf.mxu0
          %v2046 = vadd.f32 %v1990, %v2045
          %2047 = vmatmul.f32.gmra.mxu0 %v1969
          %v2048 = vpop.f32.mrf.mxu0
          %v2049 = vadd.f32 %v1990, %v2048
          %2050 = vmatmul.f32.gmra.mxu0 %v1970
          %v2051 = vpop.f32.mrf.mxu0
          %v2052 = vadd.f32 %v1990, %v2051
          %2053 = vmatmul.f32.gmra.mxu0 %v1971
          %v2054 = vpop.f32.mrf.mxu0
          %v2055 = vadd.f32 %v1990, %v2054
          %2056 = vdwg.mxu0
          %2057 = vst [vmem:[%s728] sm:$0xff] %v2010
          %2058 = vst [vmem:[%s728 + $0x8] sm:$0xff] %v2013
          %2059 = vst [vmem:[%s728 + $0x10] sm:$0xff] %v2016
          %2060 = vst [vmem:[%s728 + $0x18] sm:$0xff] %v2019
          %2061 = vst [vmem:[%s728 + $0x20] sm:$0xff] %v2022
          %2062 = vst [vmem:[%s728 + $0x28] sm:$0xff] %v2025
          %2063 = vst [vmem:[%s728 + $0x30] sm:$0xff] %v2028
          %2064 = vst [vmem:[%s728 + $0x38] sm:$0xff] %v2031
          %2065 = vst [vmem:[%s728 + $0x40] sm:$0xff] %v2034
          %2066 = vst [vmem:[%s728 + $0x48] sm:$0xff] %v2037
          %2067 = vst [vmem:[%s728 + $0x50] sm:$0xff] %v2040
          %2068 = vst [vmem:[%s728 + $0x58] sm:$0xff] %v2043
          %2069 = vst [vmem:[%s728 + $0x60] sm:$0xff] %v2046
          %2070 = vst [vmem:[%s728 + $0x68] sm:$0xff] %v2049
          %2071 = vst [vmem:[%s728 + $0x70] sm:$0xff] %v2052
          %2072 = vst [vmem:[%s728 + $0x78] sm:$0xff] %v2055
        $region128: #{tpu_custom_call.1} parent=67 // pred_fallthru
          _
        %s2073 = sand.u32 %s371, 1
        %s2074 = scalar_lea.sflag [#allocation8], %s2073
        %s2075 = sand.u32 %s371, 1
        %s2076 = smul.addr %s2075, 128
        %s2077 = scalar_lea.vmem [#allocation26], %s2076
        // Predicated region
        $region129: #{tpu_custom_call.1} parent=67 // pred_check
          %p2078 = pneg %p381
        $region130: #{tpu_custom_call.1} parent=67 // pred_check_branch
          %2080 = sbr.rel (%p2078) target = $region132
        $region131: #{tpu_custom_call.1} parent=67 // pred_region
          %s2081 = smul.u32 16, %s56
          %2083 = vsyncadd %s2074, 0
          %s2084 = smul.addr %s2081, 8
          %s2085 = scalar_lea.hbm %s14, %s2084
          %s2086 = sshll.u32 %s2077, 4
          %s2087 = int_to_ptr.vmem [resolvable:$true] %s2086
          %s2088 = sshll.u32 %s2085, 4
          %s2089 = int_to_ptr.hbm [resolvable:$true] %s2088
          %2094 = dma.vmem_to_hbm [thread:$0]  %s2087, 2048, %s2089, %s2074, 128, 128, 8
        $region132: #{tpu_custom_call.1} parent=67 // pred_fallthru
          _
      $region68: #{tpu_custom_call.1} parent=5 // pred_fallthru
        _
      %p2095 = scmp.le.s32.totalorder 2, %s47
      // Predicated region
      $region133: #{tpu_custom_call.1} parent=5 // pred_check
        %p2096 = pneg %p2095
      $region134: #{tpu_custom_call.1} parent=5 // pred_check_branch
        %2098 = sbr.rel (%p2096) target = $region136
      $region135: #{tpu_custom_call.1} parent=5 // pred_region
        %s2099 = ssub.s32 %s47, 2
        // Predicated region
        $region137: #{tpu_custom_call.1} parent=135 // pred_check
          %p2100 = pneg %p387
        $region138: #{tpu_custom_call.1} parent=135 // pred_check_branch
          %2102 = sbr.rel (%p2100) target = $region140
        $region139: #{tpu_custom_call.1} parent=135 // pred_region
          %s2103 = sand.u32 %s372, 1
          %s2104 = scalar_lea.sflag [#allocation8], %s2103
          %s2105 = sand.u32 %s372, 1
          %s2106 = smul.addr %s2105, 128
          %s2107 = scalar_lea.vmem [#allocation26], %s2106
          %2109 = dma.done %s2104, 2048
        $region140: #{tpu_custom_call.1} parent=135 // pred_fallthru
          _
      $region136: #{tpu_custom_call.1} parent=5 // pred_fallthru
        _
    $region6: #{tpu_custom_call.1} parent=1 // loop_footer
      %s51 = sadd.s32 1, %s47
    $region7: #{tpu_custom_call.1} parent=1 // loop_footer_branch
      %46 = sbr.rel target = $region3
    $region8: #{tpu_custom_call.1} parent=1 // loop_exit
      _
    %2110 = vsyncpa [#allocation7], 1
    %s2111 = scalar_lea.sflag [#allocation7], 1
    %2112 = vsyncpa %s2111, 1
    %2113 = vsyncpa [#allocation10], 1
    %s2114 = scalar_lea.sflag [#allocation10], 1
    %2115 = vsyncpa %s2114, 1
    %2116 = vsyncpa [#allocation13], 1
    %2117 = vsyncpa [#allocation16], 1
    %2118 = vsyncpa [#allocation19], 1
    %2119 = vsyncpa [#allocation22], 1
    %2120 = vsyncpa [#allocation25], 1
    %2121 = vsyncpa [#allocation8], 1
    %s2122 = scalar_lea.sflag [#allocation8], 1
    %2123 = vsyncpa %s2122, 1

</llo_original>
